<compile_context>
chip_gen: v7x
topology: tpu7x:2x2x1
jax: 0.10.0
libtpu: 0.0.40
codegen_flags: <defaults>
</compile_context>

<pallas_src>
import functools

import numpy as np

import jax
import jax.numpy as jnp
from jax.experimental import pallas as pl
from jax.experimental.pallas import tpu as pltpu

DISC_WIDTH = 40      # Discriminator fc3 output width (fixed by the module)
LANES = 128


# ----------------------------- Pallas kernel --------------------------------
def _fused_forward_kernel(
    x_ref,
    we1_ref, be1_ref,      # enc1: D0 -> D1
    we2_ref, be2_ref,      # enc2: D1 -> D2
    wd1_ref, bd1_ref,      # dec1: D2 -> D1
    wd2_ref, bd2_ref,      # dec2: D1 -> D0
    wdsc_ref, bdsc_ref,    # folded discriminator: D2 -> (COMB - D2)
    zdisc_ref, recons_ref,
):
    x = x_ref[...]

    # Encoder
    h1 = jnp.tanh(
        jnp.dot(x, we1_ref[...], preferred_element_type=jnp.float32) + be1_ref[...]
    )
    z = jnp.tanh(
        jnp.dot(h1, we2_ref[...], preferred_element_type=jnp.float32) + be2_ref[...]
    )

    # Discriminator branch (fc1/fc2/fc3 pre-folded into one matmul; its columns
    # are padded so that concat(z, disc) is exactly the lane-dense slab width).
    disc = jax.nn.sigmoid(
        jnp.dot(z, wdsc_ref[...], preferred_element_type=jnp.float32) + bdsc_ref[...]
    )

    # Single lane-dense combined output slab: [ z | disc | pad ] -> unmasked stores.
    zdisc_ref[...] = jnp.concatenate([z, disc], axis=-1)

    # Decoder branch
    r = jnp.tanh(
        jnp.dot(z, wd1_ref[...], preferred_element_type=jnp.float32) + bd1_ref[...]
    )
    recons_ref[...] = jnp.tanh(
        jnp.dot(r, wd2_ref[...], preferred_element_type=jnp.float32) + bd2_ref[...]
    )


# --------------------------- one-time param prep ------------------------------
def prepare_params(params):
    """Hoisted out of the per-call path:
       - transpose PyTorch-style (out,in) Linear weights to (in,out),
       - reshape biases to (1,out),
       - fold fc1*fc2*fc3 into one (D2, COMB-D2) matmul (done in float64 on the
         host to avoid fp32 summation-order drift), padded so that
         D2 + disc_cols == round_up(D2 + 40, 128) for a lane-dense output slab."""

    def wt(name):
        return jnp.asarray(params[f"{name}_w"], jnp.float32).T

    def b2(name):
        return jnp.asarray(params[f"{name}_b"], jnp.float32).reshape(1, -1)

    d2 = int(params["enc2_w"].shape[0])
    comb = ((d2 + DISC_WIDTH + LANES - 1) // LANES) * LANES
    disc_cols = comb - d2

    # Host-side float64 fold of the three discriminator Linears (no BN /
    # activation between them in Discriminator.forward, so this is exact).
    wf1 = np.asarray(params["fc1_w"], np.float64).T
    wf2 = np.asarray(params["fc2_w"], np.float64).T
    wf3 = np.asarray(params["fc3_w"], np.float64).T
    bf1 = np.asarray(params["fc1_b"], np.float64)
    bf2 = np.asarray(params["fc2_b"], np.float64)
    bf3 = np.asarray(params["fc3_b"], np.float64)

    w_disc = wf1 @ wf2 @ wf3                    # (D2, 40)
    b_disc = (bf1 @ wf2 + bf2) @ wf3 + bf3      # (40,)
    pad = disc_cols - w_disc.shape[1]
    w_disc = np.pad(w_disc, ((0, 0), (0, pad)))
    b_disc = np.pad(b_disc, (0, pad)).reshape(1, -1)

    return {
        "we1": wt("enc1"), "be1": b2("enc1"),
        "we2": wt("enc2"), "be2": b2("enc2"),
        "wd1": wt("dec1"), "bd1": b2("dec1"),
        "wd2": wt("dec2"), "bd2": b2("dec2"),
        "wdsc": jnp.asarray(w_disc, jnp.float32),
        "bdsc": jnp.asarray(b_disc, jnp.float32),
    }


# ------------------------------- tiling helpers -------------------------------
def _vmem_capacity_bytes():
    try:
        return int(pltpu.get_tpu_info().vmem_capacity_bytes)
    except Exception:
        return 64 << 20   # conservative default (v7x per-core VMEM)


def _vmem_limit_bytes(capacity):
    # ~56 MiB on v7x (64 MiB core), ~100 MiB on v5e/v6e (128 MiB core).
    return max(32 << 20, min(capacity - (8 << 20), 100 << 20))


def _choose_batch_tile(n, d0, d1, d2, comb, budget_bytes):
    """Largest batch tile that (a) does not exceed n-ish and (b) keeps the
    double-buffered streaming footprint inside the VMEM budget."""
    if n < 256:
        # Small-N inference path: one grid step, pad only to 8 sublanes.
        return max(8, ((n + 7) // 8) * 8)
    # Per-row VMEM bytes: double-buffered x / recons / combined-output streams
    # plus live fp32 temporaries (h1, r, z, disc).
    per_row = 4 * (2 * (2 * d0 + comb) + 2 * d1 + d2 + comb)
    for tm in (4096, 2048, 1024, 512, 256):
        if n >= tm and tm * per_row <= budget_bytes:
            return tm
    return 256


# ------------------------------- wrapper -------------------------------------
@functools.partial(jax.jit, static_argnames=("single_buffer_weights",))
def deep_multiview_fuzzy_kmeans_forward(x, prep, single_buffer_weights=True):
    """forward(x) -> (z, recons_x, disc_output). x: (N, D0) float32, rows = samples."""
    n, d0 = x.shape
    d1 = prep["we1"].shape[1]
    d2 = prep["we2"].shape[1]
    disc_cols = prep["wdsc"].shape[1]
    comb = d2 + disc_cols                       # lane-dense combined slab width

    vmem_cap = _vmem_capacity_bytes()
    vmem_limit = _vmem_limit_bytes(vmem_cap)
    weight_bytes = 4 * sum(int(prep[k].size) for k in prep)
    budget = vmem_limit - 2 * weight_bytes - (2 << 20)

    tm = _choose_batch_tile(n, d0, d1, d2, comb, budget)
    n_pad = pl.cdiv(n, tm) * tm
    if n_pad != n:
        x = jnp.pad(x, ((0, n_pad - n), (0, 0)))
    grid = (n_pad // tm,)

    def row_spec(d):
        return pl.BlockSpec((tm, d), lambda i: (i, 0))

    def const_spec(arr):
        # Weights/biases: same block every step -> VMEM-resident. Constant
        # index_maps never revisit a new block, so a second pipeline buffer is
        # pure waste; request single buffering when supported.
        if single_buffer_weights:
            return pl.BlockSpec(arr.shape, lambda i: (0, 0),
                                pipeline_mode=pl.Buffered(1))
        return pl.BlockSpec(arr.shape, lambda i: (0, 0))

    operands = (
        x,
        prep["we1"], prep["be1"],
        prep["we2"], prep["be2"],
        prep["wd1"], prep["bd1"],
        prep["wd2"], prep["bd2"],
        prep["wdsc"], prep["bdsc"],
    )
    in_specs = [row_spec(d0)] + [const_spec(a) for a in operands[1:]]
    out_specs = (row_spec(comb), row_spec(d0))
    out_shape = (
        jax.ShapeDtypeStruct((n_pad, comb), jnp.float32),   # [z | disc | pad]
        jax.ShapeDtypeStruct((n_pad, d0), jnp.float32),     # recons_x
    )

    flops = 2 * n_pad * (d0 * d1 + d1 * d2 + d2 * disc_cols + d2 * d1 + d1 * d0)
    transcendentals = n_pad * (2 * d1 + d2 + d0 + disc_cols)
    weight_elems = sum(int(a.size) for a in operands[1:])
    bytes_accessed = 4 * (n_pad * (2 * d0 + comb) + weight_elems)

    zdisc, recons_x = pl.pallas_call(
        _fused_forward_kernel,
        grid_spec=pltpu.PrefetchScalarGridSpec(
            num_scalar_prefetch=0,
            grid=grid,
            in_specs=in_specs,
            out_specs=out_specs,
        ),
        out_shape=out_shape,
        compiler_params=pltpu.CompilerParams(
            dimension_semantics=("parallel",),   # shard batch grid across v7x TCs
            vmem_limit_bytes=vmem_limit,
        ),
        cost_estimate=pl.CostEstimate(
            flops=flops,
            transcendentals=transcendentals,
            bytes_accessed=bytes_accessed,
        ),
    )(*operands)

    z = zdisc[:n, :d2]
    disc = zdisc[:n, d2:d2 + DISC_WIDTH]
    return z, recons_x[:n], disc


# ----------------------- deterministic param init ----------------------------
def init_params(key, D0, D1, D2):
    """PyTorch-Linear-style uniform(-1/sqrt(fan_in), 1/sqrt(fan_in)) init."""
    dims = {
        "enc1": (D1, D0),
        "enc2": (D2, D1),
        "dec1": (D1, D2),
        "dec2": (D0, D1),
        "fc1": (128, D2),
        "fc2": (64, 128),
        "fc3": (DISC_WIDTH, 64),
    }
    params = {}
    keys = jax.random.split(key, 2 * len(dims))
    for i, (name, (out_d, in_d)) in enumerate(dims.items()):
        bound = 1.0 / jnp.sqrt(jnp.float32(in_d))
        params[f"{name}_w"] = jax.random.uniform(
            keys[2 * i], (out_d, in_d), jnp.float32, -bound, bound
        )
        params[f"{name}_b"] = jax.random.uniform(
            keys[2 * i + 1], (out_d,), jnp.float32, -bound, bound
        )
    return params


# ------------------------------ reference ------------------------------------
def reference_forward(x, params):
    def lin(h, name):
        return h @ params[f"{name}_w"].T + params[f"{name}_b"]

    z = jnp.tanh(lin(jnp.tanh(lin(x, "enc1")), "enc2"))
    disc = jax.nn.sigmoid(lin(lin(lin(z, "fc1"), "fc2"), "fc3"))
    recons = jnp.tanh(lin(jnp.tanh(lin(z, "dec1")), "dec2"))
    return z, recons, disc


if __name__ == "__main__":
    # Small shapes consistent with layers=[D0, D1, D2] and the fixed
    # Discriminator widths (128, 64, 40).
    N, D0, D1, D2 = 8, 256, 128, 64

    key = jax.random.PRNGKey(0)
    k_x, k_p = jax.random.split(key)
    x = jax.random.normal(k_x, (N, D0), dtype=jnp.float32)
    params = init_params(k_p, D0, D1, D2)

    # One-time param prep (transpose + float64 discriminator fold + lane padding).
    prep = prepare_params(params)

    try:
        z, recons_x, disc_out = deep_multiview_fuzzy_kmeans_forward(x, prep)
        jax.block_until_ready((z, recons_x, disc_out))
    except Exception:
        # Fallback if this JAX build rejects single-buffered (Buffered(1)) specs.
        z, recons_x, disc_out = deep_multiview_fuzzy_kmeans_forward(
            x, prep, single_buffer_weights=False
        )
        jax.block_until_ready((z, recons_x, disc_out))

    # Sanity-check against a plain-JAX reference of the same forward pass.
    z_r, recons_r, disc_r = reference_forward(x, params)
    assert z.shape == (N, D2) and recons_x.shape == (N, D0) and disc_out.shape == (N, DISC_WIDTH)
    assert jnp.allclose(z, z_r, atol=1e-4, rtol=1e-4)
    assert jnp.allclose(recons_x, recons_r, atol=1e-4, rtol=1e-4)
    assert jnp.allclose(disc_out, disc_r, atol=1e-4, rtol=1e-4)

    # TODO(synk): BatchNorm1d layers in Discriminator and the training/pretrain/
    # fuzzy-c-means loops are not part of forward() and are intentionally omitted.

    print("KERNEL_OK")
</pallas_src>

<mosaic_0001>
module attributes {stable_mosaic.version = 11 : i64} {
  func.func @_fused_forward_kernel(%arg0: i32, %arg1: memref<8x256xf32, #tpu.memory_space<vmem>>, %arg2: memref<256x128xf32, #tpu.memory_space<vmem>>, %arg3: memref<1x128xf32, #tpu.memory_space<vmem>>, %arg4: memref<128x64xf32, #tpu.memory_space<vmem>>, %arg5: memref<1x64xf32, #tpu.memory_space<vmem>>, %arg6: memref<64x128xf32, #tpu.memory_space<vmem>>, %arg7: memref<1x128xf32, #tpu.memory_space<vmem>>, %arg8: memref<128x256xf32, #tpu.memory_space<vmem>>, %arg9: memref<1x256xf32, #tpu.memory_space<vmem>>, %arg10: memref<64x64xf32, #tpu.memory_space<vmem>>, %arg11: memref<1x64xf32, #tpu.memory_space<vmem>>, %arg12: memref<8x128xf32, #tpu.memory_space<vmem>>, %arg13: memref<8x256xf32, #tpu.memory_space<vmem>>) attributes {dimension_semantics = [#tpu.dimension_semantics<parallel>], iteration_bounds = array<i64: 1>, scalar_prefetch = 0 : i64, scratch_operands = 0 : i64, tpu.core_type = #tpu.core_type<tc>, window_params = [{transform_indices = @transform_0, window_bounds = array<i64: 8, 256>}, {pipeline_mode = #tpu.pipeline_mode<synchronous>, transform_indices = @transform_1, window_bounds = array<i64: 256, 128>}, {pipeline_mode = #tpu.pipeline_mode<synchronous>, transform_indices = @transform_2, window_bounds = array<i64: 1, 128>}, {pipeline_mode = #tpu.pipeline_mode<synchronous>, transform_indices = @transform_3, window_bounds = array<i64: 128, 64>}, {pipeline_mode = #tpu.pipeline_mode<synchronous>, transform_indices = @transform_4, window_bounds = array<i64: 1, 64>}, {pipeline_mode = #tpu.pipeline_mode<synchronous>, transform_indices = @transform_5, window_bounds = array<i64: 64, 128>}, {pipeline_mode = #tpu.pipeline_mode<synchronous>, transform_indices = @transform_6, window_bounds = array<i64: 1, 128>}, {pipeline_mode = #tpu.pipeline_mode<synchronous>, transform_indices = @transform_7, window_bounds = array<i64: 128, 256>}, {pipeline_mode = #tpu.pipeline_mode<synchronous>, transform_indices = @transform_8, window_bounds = array<i64: 1, 256>}, {pipeline_mode = #tpu.pipeline_mode<synchronous>, transform_indices = @transform_9, window_bounds = array<i64: 64, 64>}, {pipeline_mode = #tpu.pipeline_mode<synchronous>, transform_indices = @transform_10, window_bounds = array<i64: 1, 64>}, {transform_indices = @transform_11, window_bounds = array<i64: 8, 128>}, {transform_indices = @transform_12, window_bounds = array<i64: 8, 256>}]} {
    %c0 = arith.constant 0 : index
    %c0_0 = arith.constant 0 : index
    %0 = vector.load %arg1[%c0, %c0_0] : memref<8x256xf32, #tpu.memory_space<vmem>>, vector<8x256xf32>
    %c0_1 = arith.constant 0 : index
    %c0_2 = arith.constant 0 : index
    %1 = vector.load %arg2[%c0_1, %c0_2] : memref<256x128xf32, #tpu.memory_space<vmem>>, vector<256x128xf32>
    %cst = arith.constant dense<0.000000e+00> : vector<8x128xf32>
    %2 = tpu.matmul %0, %1, %cst {dimension_numbers = #tpu.dot_dimension_numbers<[1], [0], [0], [1], [0, 0, 1, 1], [], []>} : vector<8x256xf32>, vector<256x128xf32>, vector<8x128xf32> -> vector<8x128xf32>
    %c0_3 = arith.constant 0 : index
    %c0_4 = arith.constant 0 : index
    %3 = vector.load %arg3[%c0_3, %c0_4] : memref<1x128xf32, #tpu.memory_space<vmem>>, vector<1x128xf32>
    %4 = vector.broadcast %3 : vector<1x128xf32> to vector<8x128xf32>
    %5 = arith.addf %2, %4 : vector<8x128xf32>
    %6 = math.tanh %5 : vector<8x128xf32>
    %c0_5 = arith.constant 0 : index
    %c0_6 = arith.constant 0 : index
    %7 = vector.load %arg4[%c0_5, %c0_6] : memref<128x64xf32, #tpu.memory_space<vmem>>, vector<128x64xf32>
    %cst_7 = arith.constant dense<0.000000e+00> : vector<8x64xf32>
    %8 = tpu.matmul %6, %7, %cst_7 {dimension_numbers = #tpu.dot_dimension_numbers<[1], [0], [0], [1], [0, 0, 1, 1], [], []>} : vector<8x128xf32>, vector<128x64xf32>, vector<8x64xf32> -> vector<8x64xf32>
    %c0_8 = arith.constant 0 : index
    %c0_9 = arith.constant 0 : index
    %9 = vector.load %arg5[%c0_8, %c0_9] : memref<1x64xf32, #tpu.memory_space<vmem>>, vector<1x64xf32>
    %10 = vector.broadcast %9 : vector<1x64xf32> to vector<8x64xf32>
    %11 = arith.addf %8, %10 : vector<8x64xf32>
    %12 = math.tanh %11 : vector<8x64xf32>
    %c0_10 = arith.constant 0 : index
    %c0_11 = arith.constant 0 : index
    %13 = vector.load %arg10[%c0_10, %c0_11] : memref<64x64xf32, #tpu.memory_space<vmem>>, vector<64x64xf32>
    %cst_12 = arith.constant dense<0.000000e+00> : vector<8x64xf32>
    %14 = tpu.matmul %12, %13, %cst_12 {dimension_numbers = #tpu.dot_dimension_numbers<[1], [0], [0], [1], [0, 0, 1, 1], [], []>} : vector<8x64xf32>, vector<64x64xf32>, vector<8x64xf32> -> vector<8x64xf32>
    %c0_13 = arith.constant 0 : index
    %c0_14 = arith.constant 0 : index
    %15 = vector.load %arg11[%c0_13, %c0_14] : memref<1x64xf32, #tpu.memory_space<vmem>>, vector<1x64xf32>
    %16 = vector.broadcast %15 : vector<1x64xf32> to vector<8x64xf32>
    %17 = arith.addf %14, %16 : vector<8x64xf32>
    %18 = arith.negf %17 : vector<8x64xf32>
    %19 = math.exp %18 : vector<8x64xf32>
    %cst_15 = arith.constant 1.000000e+00 : f32
    %20 = vector.broadcast %cst_15 : f32 to vector<8x64xf32>
    %21 = arith.addf %20, %19 : vector<8x64xf32>
    %22 = arith.divf %20, %21 : vector<8x64xf32>
    %23 = tpu.concatenate %12, %22 in 1 : vector<8x64xf32>, vector<8x64xf32> -> vector<8x128xf32>
    %c0_16 = arith.constant 0 : index
    %c0_17 = arith.constant 0 : index
    %24 = vector.load %arg12[%c0_16, %c0_17] : memref<8x128xf32, #tpu.memory_space<vmem>>, vector<8x128xf32>
    tpu.vector_store %arg12[%c0_16, %c0_17], %23 {strides = array<i32>} : memref<8x128xf32, #tpu.memory_space<vmem>>, vector<8x128xf32>,
    %c0_18 = arith.constant 0 : index
    %c0_19 = arith.constant 0 : index
    %25 = vector.load %arg6[%c0_18, %c0_19] : memref<64x128xf32, #tpu.memory_space<vmem>>, vector<64x128xf32>
    %cst_20 = arith.constant dense<0.000000e+00> : vector<8x128xf32>
    %26 = tpu.matmul %12, %25, %cst_20 {dimension_numbers = #tpu.dot_dimension_numbers<[1], [0], [0], [1], [0, 0, 1, 1], [], []>} : vector<8x64xf32>, vector<64x128xf32>, vector<8x128xf32> -> vector<8x128xf32>
    %c0_21 = arith.constant 0 : index
    %c0_22 = arith.constant 0 : index
    %27 = vector.load %arg7[%c0_21, %c0_22] : memref<1x128xf32, #tpu.memory_space<vmem>>, vector<1x128xf32>
    %28 = vector.broadcast %27 : vector<1x128xf32> to vector<8x128xf32>
    %29 = arith.addf %26, %28 : vector<8x128xf32>
    %30 = math.tanh %29 : vector<8x128xf32>
    %c0_23 = arith.constant 0 : index
    %c0_24 = arith.constant 0 : index
    %31 = vector.load %arg8[%c0_23, %c0_24] : memref<128x256xf32, #tpu.memory_space<vmem>>, vector<128x256xf32>
    %cst_25 = arith.constant dense<0.000000e+00> : vector<8x256xf32>
    %32 = tpu.matmul %30, %31, %cst_25 {dimension_numbers = #tpu.dot_dimension_numbers<[1], [0], [0], [1], [0, 0, 1, 1], [], []>} : vector<8x128xf32>, vector<128x256xf32>, vector<8x256xf32> -> vector<8x256xf32>
    %c0_26 = arith.constant 0 : index
    %c0_27 = arith.constant 0 : index
    %33 = vector.load %arg9[%c0_26, %c0_27] : memref<1x256xf32, #tpu.memory_space<vmem>>, vector<1x256xf32>
    %34 = vector.broadcast %33 : vector<1x256xf32> to vector<8x256xf32>
    %35 = arith.addf %32, %34 : vector<8x256xf32>
    %36 = math.tanh %35 : vector<8x256xf32>
    %c0_28 = arith.constant 0 : index
    %c0_29 = arith.constant 0 : index
    %37 = vector.load %arg13[%c0_28, %c0_29] : memref<8x256xf32, #tpu.memory_space<vmem>>, vector<8x256xf32>
    tpu.vector_store %arg13[%c0_28, %c0_29], %36 {strides = array<i32>} : memref<8x256xf32, #tpu.memory_space<vmem>>, vector<8x256xf32>,
    return
  }
  func.func @transform_0(%arg0: i32) -> (i32, i32) {
    %c0_i32 = arith.constant 0 : i32
    %c0_i32_0 = arith.constant 0 : i32
    return %arg0, %c0_i32 : i32, i32
  }
  func.func @transform_1(%arg0: i32) -> (i32, i32) {
    %c0_i32 = arith.constant 0 : i32
    %c0_i32_0 = arith.constant 0 : i32
    %c0_i32_1 = arith.constant 0 : i32
    return %c0_i32, %c0_i32_0 : i32, i32
  }
  func.func @transform_2(%arg0: i32) -> (i32, i32) {
    %c0_i32 = arith.constant 0 : i32
    %c0_i32_0 = arith.constant 0 : i32
    %c0_i32_1 = arith.constant 0 : i32
    return %c0_i32, %c0_i32_0 : i32, i32
  }
  func.func @transform_3(%arg0: i32) -> (i32, i32) {
    %c0_i32 = arith.constant 0 : i32
    %c0_i32_0 = arith.constant 0 : i32
    %c0_i32_1 = arith.constant 0 : i32
    return %c0_i32, %c0_i32_0 : i32, i32
  }
  func.func @transform_4(%arg0: i32) -> (i32, i32) {
    %c0_i32 = arith.constant 0 : i32
    %c0_i32_0 = arith.constant 0 : i32
    %c0_i32_1 = arith.constant 0 : i32
    return %c0_i32, %c0_i32_0 : i32, i32
  }
  func.func @transform_5(%arg0: i32) -> (i32, i32) {
    %c0_i32 = arith.constant 0 : i32
    %c0_i32_0 = arith.constant 0 : i32
    %c0_i32_1 = arith.constant 0 : i32
    return %c0_i32, %c0_i32_0 : i32, i32
  }
  func.func @transform_6(%arg0: i32) -> (i32, i32) {
    %c0_i32 = arith.constant 0 : i32
    %c0_i32_0 = arith.constant 0 : i32
    %c0_i32_1 = arith.constant 0 : i32
    return %c0_i32, %c0_i32_0 : i32, i32
  }
  func.func @transform_7(%arg0: i32) -> (i32, i32) {
    %c0_i32 = arith.constant 0 : i32
    %c0_i32_0 = arith.constant 0 : i32
    %c0_i32_1 = arith.constant 0 : i32
    return %c0_i32, %c0_i32_0 : i32, i32
  }
  func.func @transform_8(%arg0: i32) -> (i32, i32) {
    %c0_i32 = arith.constant 0 : i32
    %c0_i32_0 = arith.constant 0 : i32
    %c0_i32_1 = arith.constant 0 : i32
    return %c0_i32, %c0_i32_0 : i32, i32
  }
  func.func @transform_9(%arg0: i32) -> (i32, i32) {
    %c0_i32 = arith.constant 0 : i32
    %c0_i32_0 = arith.constant 0 : i32
    %c0_i32_1 = arith.constant 0 : i32
    return %c0_i32, %c0_i32_0 : i32, i32
  }
  func.func @transform_10(%arg0: i32) -> (i32, i32) {
    %c0_i32 = arith.constant 0 : i32
    %c0_i32_0 = arith.constant 0 : i32
    %c0_i32_1 = arith.constant 0 : i32
    return %c0_i32, %c0_i32_0 : i32, i32
  }
  func.func @transform_11(%arg0: i32) -> (i32, i32) {
    %c0_i32 = arith.constant 0 : i32
    %c0_i32_0 = arith.constant 0 : i32
    return %arg0, %c0_i32 : i32, i32
  }
  func.func @transform_12(%arg0: i32) -> (i32, i32) {
    %c0_i32 = arith.constant 0 : i32
    %c0_i32_0 = arith.constant 0 : i32
    return %arg0, %c0_i32 : i32, i32
  }
}

module attributes {stable_mosaic.version = 11 : i64} {
  func.func @_fused_forward_kernel(%arg0: i32, %arg1: memref<8x256xf32, #tpu.memory_space<vmem>>, %arg2: memref<256x128xf32, #tpu.memory_space<vmem>>, %arg3: memref<1x128xf32, #tpu.memory_space<vmem>>, %arg4: memref<128x64xf32, #tpu.memory_space<vmem>>, %arg5: memref<1x64xf32, #tpu.memory_space<vmem>>, %arg6: memref<64x128xf32, #tpu.memory_space<vmem>>, %arg7: memref<1x128xf32, #tpu.memory_space<vmem>>, %arg8: memref<128x256xf32, #tpu.memory_space<vmem>>, %arg9: memref<1x256xf32, #tpu.memory_space<vmem>>, %arg10: memref<64x64xf32, #tpu.memory_space<vmem>>, %arg11: memref<1x64xf32, #tpu.memory_space<vmem>>, %arg12: memref<8x128xf32, #tpu.memory_space<vmem>>, %arg13: memref<8x256xf32, #tpu.memory_space<vmem>>) attributes {dimension_semantics = [#tpu.dimension_semantics<parallel>], iteration_bounds = array<i64: 1>, scalar_prefetch = 0 : i64, scratch_operands = 0 : i64, tpu.core_type = #tpu.core_type<tc>, window_params = [{transform_indices = @transform_0, window_bounds = array<i64: 8, 256>}, {pipeline_mode = #tpu.pipeline_mode<synchronous>, transform_indices = @transform_1, window_bounds = array<i64: 256, 128>}, {pipeline_mode = #tpu.pipeline_mode<synchronous>, transform_indices = @transform_2, window_bounds = array<i64: 1, 128>}, {pipeline_mode = #tpu.pipeline_mode<synchronous>, transform_indices = @transform_3, window_bounds = array<i64: 128, 64>}, {pipeline_mode = #tpu.pipeline_mode<synchronous>, transform_indices = @transform_4, window_bounds = array<i64: 1, 64>}, {pipeline_mode = #tpu.pipeline_mode<synchronous>, transform_indices = @transform_5, window_bounds = array<i64: 64, 128>}, {pipeline_mode = #tpu.pipeline_mode<synchronous>, transform_indices = @transform_6, window_bounds = array<i64: 1, 128>}, {pipeline_mode = #tpu.pipeline_mode<synchronous>, transform_indices = @transform_7, window_bounds = array<i64: 128, 256>}, {pipeline_mode = #tpu.pipeline_mode<synchronous>, transform_indices = @transform_8, window_bounds = array<i64: 1, 256>}, {pipeline_mode = #tpu.pipeline_mode<synchronous>, transform_indices = @transform_9, window_bounds = array<i64: 64, 64>}, {pipeline_mode = #tpu.pipeline_mode<synchronous>, transform_indices = @transform_10, window_bounds = array<i64: 1, 64>}, {transform_indices = @transform_11, window_bounds = array<i64: 8, 128>}, {transform_indices = @transform_12, window_bounds = array<i64: 8, 256>}]} {
    %c0 = arith.constant 0 : index
    %c0_0 = arith.constant 0 : index
    %0 = vector.load %arg1[%c0, %c0_0] : memref<8x256xf32, #tpu.memory_space<vmem>>, vector<8x256xf32>
    %c0_1 = arith.constant 0 : index
    %c0_2 = arith.constant 0 : index
    %1 = vector.load %arg2[%c0_1, %c0_2] : memref<256x128xf32, #tpu.memory_space<vmem>>, vector<256x128xf32>
    %cst = arith.constant dense<0.000000e+00> : vector<8x128xf32>
    %2 = tpu.matmul %0, %1, %cst {dimension_numbers = #tpu.dot_dimension_numbers<[1], [0], [0], [1], [0, 0, 1, 1], [], []>} : vector<8x256xf32>, vector<256x128xf32>, vector<8x128xf32> -> vector<8x128xf32>
    %c0_3 = arith.constant 0 : index
    %c0_4 = arith.constant 0 : index
    %3 = vector.load %arg3[%c0_3, %c0_4] : memref<1x128xf32, #tpu.memory_space<vmem>>, vector<1x128xf32>
    %4 = vector.broadcast %3 : vector<1x128xf32> to vector<8x128xf32>
    %5 = arith.addf %2, %4 : vector<8x128xf32>
    %6 = math.tanh %5 : vector<8x128xf32>
    %c0_5 = arith.constant 0 : index
    %c0_6 = arith.constant 0 : index
    %7 = vector.load %arg4[%c0_5, %c0_6] : memref<128x64xf32, #tpu.memory_space<vmem>>, vector<128x64xf32>
    %cst_7 = arith.constant dense<0.000000e+00> : vector<8x64xf32>
    %8 = tpu.matmul %6, %7, %cst_7 {dimension_numbers = #tpu.dot_dimension_numbers<[1], [0], [0], [1], [0, 0, 1, 1], [], []>} : vector<8x128xf32>, vector<128x64xf32>, vector<8x64xf32> -> vector<8x64xf32>
    %c0_8 = arith.constant 0 : index
    %c0_9 = arith.constant 0 : index
    %9 = vector.load %arg5[%c0_8, %c0_9] : memref<1x64xf32, #tpu.memory_space<vmem>>, vector<1x64xf32>
    %10 = vector.broadcast %9 : vector<1x64xf32> to vector<8x64xf32>
    %11 = arith.addf %8, %10 : vector<8x64xf32>
    %12 = math.tanh %11 : vector<8x64xf32>
    %c0_10 = arith.constant 0 : index
    %c0_11 = arith.constant 0 : index
    %13 = vector.load %arg10[%c0_10, %c0_11] : memref<64x64xf32, #tpu.memory_space<vmem>>, vector<64x64xf32>
    %cst_12 = arith.constant dense<0.000000e+00> : vector<8x64xf32>
    %14 = tpu.matmul %12, %13, %cst_12 {dimension_numbers = #tpu.dot_dimension_numbers<[1], [0], [0], [1], [0, 0, 1, 1], [], []>} : vector<8x64xf32>, vector<64x64xf32>, vector<8x64xf32> -> vector<8x64xf32>
    %c0_13 = arith.constant 0 : index
    %c0_14 = arith.constant 0 : index
    %15 = vector.load %arg11[%c0_13, %c0_14] : memref<1x64xf32, #tpu.memory_space<vmem>>, vector<1x64xf32>
    %16 = vector.broadcast %15 : vector<1x64xf32> to vector<8x64xf32>
    %17 = arith.addf %14, %16 : vector<8x64xf32>
    %18 = arith.negf %17 : vector<8x64xf32>
    %19 = math.exp %18 : vector<8x64xf32>
    %cst_15 = arith.constant 1.000000e+00 : f32
    %20 = vector.broadcast %cst_15 : f32 to vector<8x64xf32>
    %21 = arith.addf %20, %19 : vector<8x64xf32>
    %22 = arith.divf %20, %21 : vector<8x64xf32>
    %23 = tpu.concatenate %12, %22 in 1 : vector<8x64xf32>, vector<8x64xf32> -> vector<8x128xf32>
    %c0_16 = arith.constant 0 : index
    %c0_17 = arith.constant 0 : index
    %24 = vector.load %arg12[%c0_16, %c0_17] : memref<8x128xf32, #tpu.memory_space<vmem>>, vector<8x128xf32>
    tpu.vector_store %arg12[%c0_16, %c0_17], %23 {strides = array<i32>} : memref<8x128xf32, #tpu.memory_space<vmem>>, vector<8x128xf32>,
    %c0_18 = arith.constant 0 : index
    %c0_19 = arith.constant 0 : index
    %25 = vector.load %arg6[%c0_18, %c0_19] : memref<64x128xf32, #tpu.memory_space<vmem>>, vector<64x128xf32>
    %cst_20 = arith.constant dense<0.000000e+00> : vector<8x128xf32>
    %26 = tpu.matmul %12, %25, %cst_20 {dimension_numbers = #tpu.dot_dimension_numbers<[1], [0], [0], [1], [0, 0, 1, 1], [], []>} : vector<8x64xf32>, vector<64x128xf32>, vector<8x128xf32> -> vector<8x128xf32>
    %c0_21 = arith.constant 0 : index
    %c0_22 = arith.constant 0 : index
    %27 = vector.load %arg7[%c0_21, %c0_22] : memref<1x128xf32, #tpu.memory_space<vmem>>, vector<1x128xf32>
    %28 = vector.broadcast %27 : vector<1x128xf32> to vector<8x128xf32>
    %29 = arith.addf %26, %28 : vector<8x128xf32>
    %30 = math.tanh %29 : vector<8x128xf32>
    %c0_23 = arith.constant 0 : index
    %c0_24 = arith.constant 0 : index
    %31 = vector.load %arg8[%c0_23, %c0_24] : memref<128x256xf32, #tpu.memory_space<vmem>>, vector<128x256xf32>
    %cst_25 = arith.constant dense<0.000000e+00> : vector<8x256xf32>
    %32 = tpu.matmul %30, %31, %cst_25 {dimension_numbers = #tpu.dot_dimension_numbers<[1], [0], [0], [1], [0, 0, 1, 1], [], []>} : vector<8x128xf32>, vector<128x256xf32>, vector<8x256xf32> -> vector<8x256xf32>
    %c0_26 = arith.constant 0 : index
    %c0_27 = arith.constant 0 : index
    %33 = vector.load %arg9[%c0_26, %c0_27] : memref<1x256xf32, #tpu.memory_space<vmem>>, vector<1x256xf32>
    %34 = vector.broadcast %33 : vector<1x256xf32> to vector<8x256xf32>
    %35 = arith.addf %32, %34 : vector<8x256xf32>
    %36 = math.tanh %35 : vector<8x256xf32>
    %c0_28 = arith.constant 0 : index
    %c0_29 = arith.constant 0 : index
    %37 = vector.load %arg13[%c0_28, %c0_29] : memref<8x256xf32, #tpu.memory_space<vmem>>, vector<8x256xf32>
    tpu.vector_store %arg13[%c0_28, %c0_29], %36 {strides = array<i32>} : memref<8x256xf32, #tpu.memory_space<vmem>>, vector<8x256xf32>,
    return
  }
  func.func @transform_0(%arg0: i32) -> (i32, i32) {
    %c0_i32 = arith.constant 0 : i32
    %c0_i32_0 = arith.constant 0 : i32
    return %arg0, %c0_i32 : i32, i32
  }
  func.func @transform_1(%arg0: i32) -> (i32, i32) {
    %c0_i32 = arith.constant 0 : i32
    %c0_i32_0 = arith.constant 0 : i32
    %c0_i32_1 = arith.constant 0 : i32
    return %c0_i32, %c0_i32_0 : i32, i32
  }
  func.func @transform_2(%arg0: i32) -> (i32, i32) {
    %c0_i32 = arith.constant 0 : i32
    %c0_i32_0 = arith.constant 0 : i32
    %c0_i32_1 = arith.constant 0 : i32
    return %c0_i32, %c0_i32_0 : i32, i32
  }
  func.func @transform_3(%arg0: i32) -> (i32, i32) {
    %c0_i32 = arith.constant 0 : i32
    %c0_i32_0 = arith.constant 0 : i32
    %c0_i32_1 = arith.constant 0 : i32
    return %c0_i32, %c0_i32_0 : i32, i32
  }
  func.func @transform_4(%arg0: i32) -> (i32, i32) {
    %c0_i32 = arith.constant 0 : i32
    %c0_i32_0 = arith.constant 0 : i32
    %c0_i32_1 = arith.constant 0 : i32
    return %c0_i32, %c0_i32_0 : i32, i32
  }
  func.func @transform_5(%arg0: i32) -> (i32, i32) {
    %c0_i32 = arith.constant 0 : i32
    %c0_i32_0 = arith.constant 0 : i32
    %c0_i32_1 = arith.constant 0 : i32
    return %c0_i32, %c0_i32_0 : i32, i32
  }
  func.func @transform_6(%arg0: i32) -> (i32, i32) {
    %c0_i32 = arith.constant 0 : i32
    %c0_i32_0 = arith.constant 0 : i32
    %c0_i32_1 = arith.constant 0 : i32
    return %c0_i32, %c0_i32_0 : i32, i32
  }
  func.func @transform_7(%arg0: i32) -> (i32, i32) {
    %c0_i32 = arith.constant 0 : i32
    %c0_i32_0 = arith.constant 0 : i32
    %c0_i32_1 = arith.constant 0 : i32
    return %c0_i32, %c0_i32_0 : i32, i32
  }
  func.func @transform_8(%arg0: i32) -> (i32, i32) {
    %c0_i32 = arith.constant 0 : i32
    %c0_i32_0 = arith.constant 0 : i32
    %c0_i32_1 = arith.constant 0 : i32
    return %c0_i32, %c0_i32_0 : i32, i32
  }
  func.func @transform_9(%arg0: i32) -> (i32, i32) {
    %c0_i32 = arith.constant 0 : i32
    %c0_i32_0 = arith.constant 0 : i32
    %c0_i32_1 = arith.constant 0 : i32
    return %c0_i32, %c0_i32_0 : i32, i32
  }
  func.func @transform_10(%arg0: i32) -> (i32, i32) {
    %c0_i32 = arith.constant 0 : i32
    %c0_i32_0 = arith.constant 0 : i32
    %c0_i32_1 = arith.constant 0 : i32
    return %c0_i32, %c0_i32_0 : i32, i32
  }
  func.func @transform_11(%arg0: i32) -> (i32, i32) {
    %c0_i32 = arith.constant 0 : i32
    %c0_i32_0 = arith.constant 0 : i32
    return %arg0, %c0_i32 : i32, i32
  }
  func.func @transform_12(%arg0: i32) -> (i32, i32) {
    %c0_i32 = arith.constant 0 : i32
    %c0_i32_0 = arith.constant 0 : i32
    return %arg0, %c0_i32 : i32, i32
  }
}

</mosaic_0001>

<llo_original>
// kernel: deep_multiview_fuzzy_kmeans_forward.1
$region0: #{deep_multiview_fuzzy_kmeans_forward.1}
  #allocation0 [shape = 'u32[]', space=smem, size = 0x4, offset = 0x4, fixed_abs, tag = 'smem constant byte address 0x4 - core index']
  #allocation1 [shape = 'u32[144,128]{1,0:T(1,128)}', space=vmem, size = 0x12000, scoped, tag = 'internal scratch']
  %s0 = inlined_call_operand.vmem [shape: f32[8,256], index: 0, kind: input, shape index: {}]
  %s1 = inlined_call_operand.hbm [shape: f32[256,128], index: 1, kind: input, shape index: {}]
  %s2 = inlined_call_operand.vmem [shape: f32[1,128], index: 2, kind: input, shape index: {}]
  %s3 = inlined_call_operand.vmem [shape: f32[128,64], index: 3, kind: input, shape index: {}]
  %s4 = inlined_call_operand.vmem [shape: f32[1,64], index: 4, kind: input, shape index: {}]
  %s5 = inlined_call_operand.vmem [shape: f32[64,128], index: 5, kind: input, shape index: {}]
  %s6 = inlined_call_operand.vmem [shape: f32[1,128], index: 6, kind: input, shape index: {}]
  %s7 = inlined_call_operand.hbm [shape: f32[128,256], index: 7, kind: input, shape index: {}]
  %s8 = inlined_call_operand.vmem [shape: f32[1,256], index: 8, kind: input, shape index: {}]
  %s9 = inlined_call_operand.vmem [shape: f32[64,64], index: 9, kind: input, shape index: {}]
  %s10 = inlined_call_operand.vmem [shape: f32[1,64], index: 10, kind: input, shape index: {}]
  %s11 = inlined_call_operand.vmem [shape: f32[8,128], index: 11, kind: output, shape index: {0}]
  %s12 = inlined_call_operand.hbm [shape: f32[8,256], index: 12, kind: output, shape index: {1}]
  %13 = xla_tuple %s11, %s12
  %s14 = sld [smem:[#allocation0]]
  $region70: #{deep_multiview_fuzzy_kmeans_forward.1} parent=0
    _
  %s16 = ssub.s32 1, %s14
  %s17 = scalar_select 0, %s16, %s14
  $region1: #{deep_multiview_fuzzy_kmeans_forward.1} parent=0
    #allocation2 [shape = 'u8[131072]{0}', space=vmem, size = 0x20000, scoped, tag = 'input window, operand 1, single buffered']
    #allocation3 [shape = 's32[1]{0}', space=sflag, size = 0x4, scoped, tag = 'scoped memory for deep_multiview_fuzzy_kmeans_forward.1']
    #allocation4 [shape = 's32[1]{0}', space=sflag, size = 0x4, scoped, tag = 'scoped memory for deep_multiview_fuzzy_kmeans_forward.1']
    #allocation5 [shape = 'u8[131072]{0}', space=vmem, size = 0x20000, scoped, tag = 'input window, operand 7, single buffered']
    #allocation6 [shape = 's32[1]{0}', space=sflag, size = 0x4, scoped, tag = 'scoped memory for deep_multiview_fuzzy_kmeans_forward.1']
    #allocation7 [shape = 'u8[8192]{0}', space=vmem, size = 0x2000, scoped, tag = 'output window, operand 1, single buffered']
    %18 = vsyncpa [#allocation3], 0
    %19 = vsyncpa [#allocation6], 0
    %20 = vsyncpa [#allocation4], 0
    // Predicated region
    $region2: #{deep_multiview_fuzzy_kmeans_forward.1} parent=1 // pred_check
      _
    $region3: #{deep_multiview_fuzzy_kmeans_forward.1} parent=1 // pred_check_branch
      %22 = sbr.rel (0) target = $region5
    $region4: #{deep_multiview_fuzzy_kmeans_forward.1} parent=1 // pred_region
      _
    $region5: #{deep_multiview_fuzzy_kmeans_forward.1} parent=1 // pred_fallthru
      _
    // Predicated region
    $region6: #{deep_multiview_fuzzy_kmeans_forward.1} parent=1 // pred_check
      _
    $region7: #{deep_multiview_fuzzy_kmeans_forward.1} parent=1 // pred_check_branch
      %24 = sbr.rel (0) target = $region9
    $region8: #{deep_multiview_fuzzy_kmeans_forward.1} parent=1 // pred_region
      %s26 = ssub.s32 4096, 4096
      %27 = vsyncadd [#allocation3], %s26
      %s28 = sshll.u32 [#allocation2], 4
      %s29 = int_to_ptr.vmem [resolvable:$true] %s28
      %34 = dma.hbm_to_vmem [thread:$0]  %s1, 4096, %s29, [#allocation3], 128, 128, 8
    $region9: #{deep_multiview_fuzzy_kmeans_forward.1} parent=1 // pred_fallthru
      _
    // Predicated region
    $region10: #{deep_multiview_fuzzy_kmeans_forward.1} parent=1 // pred_check
      _
    $region11: #{deep_multiview_fuzzy_kmeans_forward.1} parent=1 // pred_check_branch
      %36 = sbr.rel (0) target = $region13
    $region12: #{deep_multiview_fuzzy_kmeans_forward.1} parent=1 // pred_region
      _
    $region13: #{deep_multiview_fuzzy_kmeans_forward.1} parent=1 // pred_fallthru
      _
    // Predicated region
    $region14: #{deep_multiview_fuzzy_kmeans_forward.1} parent=1 // pred_check
      _
    $region15: #{deep_multiview_fuzzy_kmeans_forward.1} parent=1 // pred_check_branch
      %38 = sbr.rel (0) target = $region17
    $region16: #{deep_multiview_fuzzy_kmeans_forward.1} parent=1 // pred_region
      _
    $region17: #{deep_multiview_fuzzy_kmeans_forward.1} parent=1 // pred_fallthru
      _
    // Predicated region
    $region18: #{deep_multiview_fuzzy_kmeans_forward.1} parent=1 // pred_check
      _
    $region19: #{deep_multiview_fuzzy_kmeans_forward.1} parent=1 // pred_check_branch
      %40 = sbr.rel (0) target = $region21
    $region20: #{deep_multiview_fuzzy_kmeans_forward.1} parent=1 // pred_region
      _
    $region21: #{deep_multiview_fuzzy_kmeans_forward.1} parent=1 // pred_fallthru
      _
    // Predicated region
    $region22: #{deep_multiview_fuzzy_kmeans_forward.1} parent=1 // pred_check
      _
    $region23: #{deep_multiview_fuzzy_kmeans_forward.1} parent=1 // pred_check_branch
      %42 = sbr.rel (0) target = $region25
    $region24: #{deep_multiview_fuzzy_kmeans_forward.1} parent=1 // pred_region
      _
    $region25: #{deep_multiview_fuzzy_kmeans_forward.1} parent=1 // pred_fallthru
      _
    // Predicated region
    $region26: #{deep_multiview_fuzzy_kmeans_forward.1} parent=1 // pred_check
      _
    $region27: #{deep_multiview_fuzzy_kmeans_forward.1} parent=1 // pred_check_branch
      %44 = sbr.rel (0) target = $region29
    $region28: #{deep_multiview_fuzzy_kmeans_forward.1} parent=1 // pred_region
      _
    $region29: #{deep_multiview_fuzzy_kmeans_forward.1} parent=1 // pred_fallthru
      _
    // Predicated region
    $region30: #{deep_multiview_fuzzy_kmeans_forward.1} parent=1 // pred_check
      _
    $region31: #{deep_multiview_fuzzy_kmeans_forward.1} parent=1 // pred_check_branch
      %46 = sbr.rel (0) target = $region33
    $region32: #{deep_multiview_fuzzy_kmeans_forward.1} parent=1 // pred_region
      %s48 = ssub.s32 4096, 4096
      %49 = vsyncadd [#allocation6], %s48
      %s50 = sshll.u32 [#allocation5], 4
      %s51 = int_to_ptr.vmem [resolvable:$true] %s50
      %56 = dma.hbm_to_vmem [thread:$0]  %s7, 4096, %s51, [#allocation6], 256, 256, 16
    $region33: #{deep_multiview_fuzzy_kmeans_forward.1} parent=1 // pred_fallthru
      _
    // Predicated region
    $region34: #{deep_multiview_fuzzy_kmeans_forward.1} parent=1 // pred_check
      _
    $region35: #{deep_multiview_fuzzy_kmeans_forward.1} parent=1 // pred_check_branch
      %58 = sbr.rel (0) target = $region37
    $region36: #{deep_multiview_fuzzy_kmeans_forward.1} parent=1 // pred_region
      _
    $region37: #{deep_multiview_fuzzy_kmeans_forward.1} parent=1 // pred_fallthru
      _
    // Predicated region
    $region38: #{deep_multiview_fuzzy_kmeans_forward.1} parent=1 // pred_check
      _
    $region39: #{deep_multiview_fuzzy_kmeans_forward.1} parent=1 // pred_check_branch
      %60 = sbr.rel (0) target = $region41
    $region40: #{deep_multiview_fuzzy_kmeans_forward.1} parent=1 // pred_region
      _
    $region41: #{deep_multiview_fuzzy_kmeans_forward.1} parent=1 // pred_fallthru
      _
    // Predicated region
    $region42: #{deep_multiview_fuzzy_kmeans_forward.1} parent=1 // pred_check
      _
    $region43: #{deep_multiview_fuzzy_kmeans_forward.1} parent=1 // pred_check_branch
      %62 = sbr.rel (0) target = $region45
    $region44: #{deep_multiview_fuzzy_kmeans_forward.1} parent=1 // pred_region
      _
    $region45: #{deep_multiview_fuzzy_kmeans_forward.1} parent=1 // pred_fallthru
      _
    // Predicated region
    $region46: #{deep_multiview_fuzzy_kmeans_forward.1} parent=1 // pred_check
      _
    $region47: #{deep_multiview_fuzzy_kmeans_forward.1} parent=1 // pred_check_branch
      %64 = sbr.rel (0) target = $region49
    $region48: #{deep_multiview_fuzzy_kmeans_forward.1} parent=1 // pred_region
      %65 = dma.done [#allocation3], 4096
    $region49: #{deep_multiview_fuzzy_kmeans_forward.1} parent=1 // pred_fallthru
      _
    // Predicated region
    $region50: #{deep_multiview_fuzzy_kmeans_forward.1} parent=1 // pred_check
      _
    $region51: #{deep_multiview_fuzzy_kmeans_forward.1} parent=1 // pred_check_branch
      %67 = sbr.rel (0) target = $region53
    $region52: #{deep_multiview_fuzzy_kmeans_forward.1} parent=1 // pred_region
      %68 = dma.done [#allocation6], 4096
    $region53: #{deep_multiview_fuzzy_kmeans_forward.1} parent=1 // pred_fallthru
      _
    %v69 = vld [vmem:[%s0] sm:$0xff]
    %v70 = vld [vmem:[%s0 + $0x8] sm:$0xff]
    %v71 = vld [vmem:[#allocation2] sm:$0xff]
    %v72 = vld [vmem:[#allocation2 + $0x8] sm:$0xff]
    %v73 = vld [vmem:[#allocation2 + $0x10] sm:$0xff]
    %v74 = vld [vmem:[#allocation2 + $0x18] sm:$0xff]
    %v75 = vld [vmem:[#allocation2 + $0x20] sm:$0xff]
    %v76 = vld [vmem:[#allocation2 + $0x28] sm:$0xff]
    %v77 = vld [vmem:[#allocation2 + $0x30] sm:$0xff]
    %v78 = vld [vmem:[#allocation2 + $0x38] sm:$0xff]
    %v79 = vld [vmem:[#allocation2 + $0x40] sm:$0xff]
    %v80 = vld [vmem:[#allocation2 + $0x48] sm:$0xff]
    %v81 = vld [vmem:[#allocation2 + $0x50] sm:$0xff]
    %v82 = vld [vmem:[#allocation2 + $0x58] sm:$0xff]
    %v83 = vld [vmem:[#allocation2 + $0x60] sm:$0xff]
    %v84 = vld [vmem:[#allocation2 + $0x68] sm:$0xff]
    %v85 = vld [vmem:[#allocation2 + $0x70] sm:$0xff]
    %v86 = vld [vmem:[#allocation2 + $0x78] sm:$0xff]
    %v87 = vld [vmem:[#allocation2 + $0x80] sm:$0xff]
    %v88 = vld [vmem:[#allocation2 + $0x88] sm:$0xff]
    %v89 = vld [vmem:[#allocation2 + $0x90] sm:$0xff]
    %v90 = vld [vmem:[#allocation2 + $0x98] sm:$0xff]
    %v91 = vld [vmem:[#allocation2 + $0xa0] sm:$0xff]
    %v92 = vld [vmem:[#allocation2 + $0xa8] sm:$0xff]
    %v93 = vld [vmem:[#allocation2 + $0xb0] sm:$0xff]
    %v94 = vld [vmem:[#allocation2 + $0xb8] sm:$0xff]
    %v95 = vld [vmem:[#allocation2 + $0xc0] sm:$0xff]
    %v96 = vld [vmem:[#allocation2 + $0xc8] sm:$0xff]
    %v97 = vld [vmem:[#allocation2 + $0xd0] sm:$0xff]
    %v98 = vld [vmem:[#allocation2 + $0xd8] sm:$0xff]
    %v99 = vld [vmem:[#allocation2 + $0xe0] sm:$0xff]
    %v100 = vld [vmem:[#allocation2 + $0xe8] sm:$0xff]
    %v101 = vld [vmem:[#allocation2 + $0xf0] sm:$0xff]
    %v102 = vld [vmem:[#allocation2 + $0xf8] sm:$0xff]
    %v103 = vld [vmem:[%s2] sm:$0x1]
    %v105 = vlaneseq
    %v106 = vshrl.u32 %v105, 7
    %v107 = vsub.s32 0, %v106
    %v108 = vrot.slane %v103, %v107
    %110 = vmatprep.subr.mxu0 0.0
    %111 = vmatpush1.msra.mxu0 %v71
    %112 = vmatprep.subr.mxu0 0.0
    %113 = vmatpush1.msra.mxu0 %v72
    %114 = vmatprep.subr.mxu0 0.0
    %115 = vmatpush1.msra.mxu0 %v73
    %116 = vmatprep.subr.mxu0 0.0
    %117 = vmatpush1.msra.mxu0 %v74
    %118 = vmatprep.subr.mxu0 0.0
    %119 = vmatpush1.msra.mxu0 %v75
    %120 = vmatprep.subr.mxu0 0.0
    %121 = vmatpush1.msra.mxu0 %v76
    %122 = vmatprep.subr.mxu0 0.0
    %123 = vmatpush1.msra.mxu0 %v77
    %124 = vmatprep.subr.mxu0 0.0
    %125 = vmatpush1.msra.mxu0 %v78
    %126 = vmatprep.subr.mxu0 0.0
    %127 = vmatpush1.msra.mxu0 %v79
    %128 = vmatprep.subr.mxu0 0.0
    %129 = vmatpush1.msra.mxu0 %v80
    %130 = vmatprep.subr.mxu0 0.0
    %131 = vmatpush1.msra.mxu0 %v81
    %132 = vmatprep.subr.mxu0 0.0
    %133 = vmatpush1.msra.mxu0 %v82
    %134 = vmatprep.subr.mxu0 0.0
    %135 = vmatpush1.msra.mxu0 %v83
    %136 = vmatprep.subr.mxu0 0.0
    %137 = vmatpush1.msra.mxu0 %v84
    %138 = vmatprep.subr.mxu0 0.0
    %139 = vmatpush1.msra.mxu0 %v85
    %140 = vmatprep.subr.mxu0 0.0
    %141 = vmatpush1.msra.mxu0 %v86
    %142 = vmatprep.subr.mxu0 0.0
    %143 = vmatpush1.msra.mxu0 %v87
    %144 = vmatprep.subr.mxu0 0.0
    %145 = vmatpush1.msra.mxu0 %v88
    %146 = vmatprep.subr.mxu0 0.0
    %147 = vmatpush1.msra.mxu0 %v89
    %148 = vmatprep.subr.mxu0 0.0
    %149 = vmatpush1.msra.mxu0 %v90
    %150 = vmatprep.subr.mxu0 0.0
    %151 = vmatpush1.msra.mxu0 %v91
    %152 = vmatprep.subr.mxu0 0.0
    %153 = vmatpush1.msra.mxu0 %v92
    %154 = vmatprep.subr.mxu0 0.0
    %155 = vmatpush1.msra.mxu0 %v93
    %156 = vmatprep.subr.mxu0 0.0
    %157 = vmatpush1.msra.mxu0 %v94
    %158 = vmatprep.subr.mxu0 0.0
    %159 = vmatpush1.msra.mxu0 %v95
    %160 = vmatprep.subr.mxu0 0.0
    %161 = vmatpush1.msra.mxu0 %v96
    %162 = vmatprep.subr.mxu0 0.0
    %163 = vmatpush1.msra.mxu0 %v97
    %164 = vmatprep.subr.mxu0 0.0
    %165 = vmatpush1.msra.mxu0 %v98
    %166 = vmatprep.subr.mxu0 0.0
    %167 = vmatpush1.msra.mxu0 %v99
    %168 = vmatprep.subr.mxu0 0.0
    %169 = vmatpush1.msra.mxu0 %v100
    %170 = vmatprep.subr.mxu0 0.0
    %171 = vmatpush1.msra.mxu0 %v101
    %172 = vmatprep.subr.mxu0 0.0
    %173 = vmatpush1.msra.mxu0 %v102
    %174 = vmatprep.mubr.f32.mxu0 %v70
    %175 = vmatmul.mubr.f32.gmra.mrb[0].mxu0 %v69
    %v176 = vpop.f32.mrb[0].mxu0
    %v177 = vadd.f32 %v108, %v176
    %v178 = vpop.f32.mrb[0].mxu0
    %179 = vdwg.mxu0
    %v180 = vtanh.pop %v177
    %v181 = vld [vmem:[%s3] sm:$0xff]
    %v182 = vld [vmem:[%s3 + $0x8] sm:$0xff]
    %v183 = vld [vmem:[%s3 + $0x10] sm:$0xff]
    %v184 = vld [vmem:[%s3 + $0x18] sm:$0xff]
    %v185 = vld [vmem:[%s3 + $0x20] sm:$0xff]
    %v186 = vld [vmem:[%s3 + $0x28] sm:$0xff]
    %v187 = vld [vmem:[%s3 + $0x30] sm:$0xff]
    %v188 = vld [vmem:[%s3 + $0x38] sm:$0xff]
    %v189 = vld [vmem:[%s3 + $0x40] sm:$0xff]
    %v190 = vld [vmem:[%s3 + $0x48] sm:$0xff]
    %v191 = vld [vmem:[%s3 + $0x50] sm:$0xff]
    %v192 = vld [vmem:[%s3 + $0x58] sm:$0xff]
    %v193 = vld [vmem:[%s3 + $0x60] sm:$0xff]
    %v194 = vld [vmem:[%s3 + $0x68] sm:$0xff]
    %v195 = vld [vmem:[%s3 + $0x70] sm:$0xff]
    %v196 = vld [vmem:[%s3 + $0x78] sm:$0xff]
    %v197 = vld [vmem:[%s4] sm:$0x1]
    %v199 = vlaneseq
    %v200 = vshrl.u32 %v199, 7
    %v201 = vsub.s32 0, %v200
    %v202 = vrot.slane %v197, %v201
    %204 = vmatprep.subr.mxu0 0.0
    %205 = vmatpush1.msra.mxu0 %v181
    %206 = vmatprep.subr.mxu0 0.0
    %207 = vmatpush1.msra.mxu0 %v182
    %208 = vmatprep.subr.mxu0 0.0
    %209 = vmatpush1.msra.mxu0 %v183
    %210 = vmatprep.subr.mxu0 0.0
    %211 = vmatpush1.msra.mxu0 %v184
    %212 = vmatprep.subr.mxu0 0.0
    %213 = vmatpush1.msra.mxu0 %v185
    %214 = vmatprep.subr.mxu0 0.0
    %215 = vmatpush1.msra.mxu0 %v186
    %216 = vmatprep.subr.mxu0 0.0
    %217 = vmatpush1.msra.mxu0 %v187
    %218 = vmatprep.subr.mxu0 0.0
    %219 = vmatpush1.msra.mxu0 %v188
    %220 = vmatprep.subr.mxu0 0.0
    %221 = vmatpush1.msra.mxu0 %v189
    %222 = vmatprep.subr.mxu0 0.0
    %223 = vmatpush1.msra.mxu0 %v190
    %224 = vmatprep.subr.mxu0 0.0
    %225 = vmatpush1.msra.mxu0 %v191
    %226 = vmatprep.subr.mxu0 0.0
    %227 = vmatpush1.msra.mxu0 %v192
    %228 = vmatprep.subr.mxu0 0.0
    %229 = vmatpush1.msra.mxu0 %v193
    %230 = vmatprep.subr.mxu0 0.0
    %231 = vmatpush1.msra.mxu0 %v194
    %232 = vmatprep.subr.mxu0 0.0
    %233 = vmatpush1.msra.mxu0 %v195
    %234 = vmatprep.subr.mxu0 0.0
    %235 = vmatpush1.msra.mxu0 %v196
    %236 = vmatprep.subr.mxu0 0.0
    %237 = vmatpush1.msra.mxu0 0.0
    %238 = vmatprep.subr.mxu0 0.0
    %239 = vmatpush1.msra.mxu0 0.0
    %240 = vmatprep.subr.mxu0 0.0
    %241 = vmatpush1.msra.mxu0 0.0
    %242 = vmatprep.subr.mxu0 0.0
    %243 = vmatpush1.msra.mxu0 0.0
    %244 = vmatprep.subr.mxu0 0.0
    %245 = vmatpush1.msra.mxu0 0.0
    %246 = vmatprep.subr.mxu0 0.0
    %247 = vmatpush1.msra.mxu0 0.0
    %248 = vmatprep.subr.mxu0 0.0
    %249 = vmatpush1.msra.mxu0 0.0
    %250 = vmatprep.subr.mxu0 0.0
    %251 = vmatpush1.msra.mxu0 0.0
    %252 = vmatprep.subr.mxu0 0.0
    %253 = vmatpush1.msra.mxu0 0.0
    %254 = vmatprep.subr.mxu0 0.0
    %255 = vmatpush1.msra.mxu0 0.0
    %256 = vmatprep.subr.mxu0 0.0
    %257 = vmatpush1.msra.mxu0 0.0
    %258 = vmatprep.subr.mxu0 0.0
    %259 = vmatpush1.msra.mxu0 0.0
    %260 = vmatprep.subr.mxu0 0.0
    %261 = vmatpush1.msra.mxu0 0.0
    %262 = vmatprep.subr.mxu0 0.0
    %263 = vmatpush1.msra.mxu0 0.0
    %264 = vmatprep.subr.mxu0 0.0
    %265 = vmatpush1.msra.mxu0 0.0
    %266 = vmatprep.subr.mxu0 0.0
    %267 = vmatpush1.msra.mxu0 0.0
    %268 = vmatprep.mubr.f32.mxu0 0.0
    %269 = vmatmul.mubr.f32.gmra.mrb[0].mxu0 %v180
    %v270 = vpop.f32.mrb[0].mxu0
    %v271 = vadd.f32 %v202, %v270
    %v272 = vpop.f32.mrb[0].mxu0
    %273 = vdwg.mxu0
    %v274 = vtanh.pop %v271
    %v275 = vld [vmem:[%s9] sm:$0xff]
    %v276 = vld [vmem:[%s9 + $0x8] sm:$0xff]
    %v277 = vld [vmem:[%s9 + $0x10] sm:$0xff]
    %v278 = vld [vmem:[%s9 + $0x18] sm:$0xff]
    %v279 = vld [vmem:[%s9 + $0x20] sm:$0xff]
    %v280 = vld [vmem:[%s9 + $0x28] sm:$0xff]
    %v281 = vld [vmem:[%s9 + $0x30] sm:$0xff]
    %v282 = vld [vmem:[%s9 + $0x38] sm:$0xff]
    %v283 = vld [vmem:[%s10] sm:$0x1]
    %v285 = vlaneseq
    %v286 = vshrl.u32 %v285, 7
    %v287 = vsub.s32 0, %v286
    %v288 = vrot.slane %v283, %v287
    %vm290 = vcmask 523264
    %v292 = vsel %vm290, %v274, 0
    %294 = vmatprep.subr.mxu0 0.0
    %295 = vmatpush1.msra.mxu0 %v275
    %296 = vmatprep.subr.mxu0 0.0
    %297 = vmatpush1.msra.mxu0 %v276
    %298 = vmatprep.subr.mxu0 0.0
    %299 = vmatpush1.msra.mxu0 %v277
    %300 = vmatprep.subr.mxu0 0.0
    %301 = vmatpush1.msra.mxu0 %v278
    %302 = vmatprep.subr.mxu0 0.0
    %303 = vmatpush1.msra.mxu0 %v279
    %304 = vmatprep.subr.mxu0 0.0
    %305 = vmatpush1.msra.mxu0 %v280
    %306 = vmatprep.subr.mxu0 0.0
    %307 = vmatpush1.msra.mxu0 %v281
    %308 = vmatprep.subr.mxu0 0.0
    %309 = vmatpush1.msra.mxu0 %v282
    %310 = vmatprep.subr.mxu0 0.0
    %311 = vmatpush1.msra.mxu0 0.0
    %312 = vmatprep.subr.mxu0 0.0
    %313 = vmatpush1.msra.mxu0 0.0
    %314 = vmatprep.subr.mxu0 0.0
    %315 = vmatpush1.msra.mxu0 0.0
    %316 = vmatprep.subr.mxu0 0.0
    %317 = vmatpush1.msra.mxu0 0.0
    %318 = vmatprep.subr.mxu0 0.0
    %319 = vmatpush1.msra.mxu0 0.0
    %320 = vmatprep.subr.mxu0 0.0
    %321 = vmatpush1.msra.mxu0 0.0
    %322 = vmatprep.subr.mxu0 0.0
    %323 = vmatpush1.msra.mxu0 0.0
    %324 = vmatprep.subr.mxu0 0.0
    %325 = vmatpush1.msra.mxu0 0.0
    %326 = vmatprep.subr.mxu0 0.0
    %327 = vmatpush1.msra.mxu0 0.0
    %328 = vmatprep.subr.mxu0 0.0
    %329 = vmatpush1.msra.mxu0 0.0
    %330 = vmatprep.subr.mxu0 0.0
    %331 = vmatpush1.msra.mxu0 0.0
    %332 = vmatprep.subr.mxu0 0.0
    %333 = vmatpush1.msra.mxu0 0.0
    %334 = vmatprep.subr.mxu0 0.0
    %335 = vmatpush1.msra.mxu0 0.0
    %336 = vmatprep.subr.mxu0 0.0
    %337 = vmatpush1.msra.mxu0 0.0
    %338 = vmatprep.subr.mxu0 0.0
    %339 = vmatpush1.msra.mxu0 0.0
    %340 = vmatprep.subr.mxu0 0.0
    %341 = vmatpush1.msra.mxu0 0.0
    %342 = vmatprep.subr.mxu0 0.0
    %343 = vmatpush1.msra.mxu0 0.0
    %344 = vmatprep.subr.mxu0 0.0
    %345 = vmatpush1.msra.mxu0 0.0
    %346 = vmatprep.subr.mxu0 0.0
    %347 = vmatpush1.msra.mxu0 0.0
    %348 = vmatprep.subr.mxu0 0.0
    %349 = vmatpush1.msra.mxu0 0.0
    %350 = vmatprep.subr.mxu0 0.0
    %351 = vmatpush1.msra.mxu0 0.0
    %352 = vmatprep.subr.mxu0 0.0
    %353 = vmatpush1.msra.mxu0 0.0
    %354 = vmatprep.subr.mxu0 0.0
    %355 = vmatpush1.msra.mxu0 0.0
    %356 = vmatprep.subr.mxu0 0.0
    %357 = vmatpush1.msra.mxu0 0.0
    %358 = vmatprep.mubr.f32.mxu0 0.0
    %359 = vmatmul.mubr.f32.gmra.mrb[0].mxu0 %v292
    %v360 = vpop.f32.mrb[0].mxu0
    %v361 = vadd.f32 %v288, %v360
    %v362 = vpop.f32.mrb[0].mxu0
    %363 = vdwg.mxu0
    %v364 = vxor.u32 %v361, 2147483648
    %v365 = vmul.f32 %v364, 1.442695
    %v366 = vpow.pop %v365
    %v367 = vadd.f32 %v366, 1.0
    %v368 = vrcp.pop %v367
    %v369 = vmul.f32 1.0, %v368
    %371 = vrot.lane.b32.xlu0 %v369, 64
    %v372 = vpop.permute.xlu0 %371
    %v374 = vsel %vm290, %v274, %v372
    %375 = vst [vmem:[%s11] sm:$0xff] %v374
    %v376 = vld [vmem:[%s5] sm:$0xff]
    %v377 = vld [vmem:[%s5 + $0x8] sm:$0xff]
    %v378 = vld [vmem:[%s5 + $0x10] sm:$0xff]
    %v379 = vld [vmem:[%s5 + $0x18] sm:$0xff]
    %v380 = vld [vmem:[%s5 + $0x20] sm:$0xff]
    %v381 = vld [vmem:[%s5 + $0x28] sm:$0xff]
    %v382 = vld [vmem:[%s5 + $0x30] sm:$0xff]
    %v383 = vld [vmem:[%s5 + $0x38] sm:$0xff]
    %v384 = vld [vmem:[%s6] sm:$0x1]
    %v386 = vlaneseq
    %v387 = vshrl.u32 %v386, 7
    %v388 = vsub.s32 0, %v387
    %v389 = vrot.slane %v384, %v388
    %391 = vmatprep.subr.mxu0 0.0
    %392 = vmatpush1.msra.mxu0 %v376
    %393 = vmatprep.subr.mxu0 0.0
    %394 = vmatpush1.msra.mxu0 %v377
    %395 = vmatprep.subr.mxu0 0.0
    %396 = vmatpush1.msra.mxu0 %v378
    %397 = vmatprep.subr.mxu0 0.0
    %398 = vmatpush1.msra.mxu0 %v379
    %399 = vmatprep.subr.mxu0 0.0
    %400 = vmatpush1.msra.mxu0 %v380
    %401 = vmatprep.subr.mxu0 0.0
    %402 = vmatpush1.msra.mxu0 %v381
    %403 = vmatprep.subr.mxu0 0.0
    %404 = vmatpush1.msra.mxu0 %v382
    %405 = vmatprep.subr.mxu0 0.0
    %406 = vmatpush1.msra.mxu0 %v383
    %407 = vmatprep.subr.mxu0 0.0
    %408 = vmatpush1.msra.mxu0 0.0
    %409 = vmatprep.subr.mxu0 0.0
    %410 = vmatpush1.msra.mxu0 0.0
    %411 = vmatprep.subr.mxu0 0.0
    %412 = vmatpush1.msra.mxu0 0.0
    %413 = vmatprep.subr.mxu0 0.0
    %414 = vmatpush1.msra.mxu0 0.0
    %415 = vmatprep.subr.mxu0 0.0
    %416 = vmatpush1.msra.mxu0 0.0
    %417 = vmatprep.subr.mxu0 0.0
    %418 = vmatpush1.msra.mxu0 0.0
    %419 = vmatprep.subr.mxu0 0.0
    %420 = vmatpush1.msra.mxu0 0.0
    %421 = vmatprep.subr.mxu0 0.0
    %422 = vmatpush1.msra.mxu0 0.0
    %423 = vmatprep.subr.mxu0 0.0
    %424 = vmatpush1.msra.mxu0 0.0
    %425 = vmatprep.subr.mxu0 0.0
    %426 = vmatpush1.msra.mxu0 0.0
    %427 = vmatprep.subr.mxu0 0.0
    %428 = vmatpush1.msra.mxu0 0.0
    %429 = vmatprep.subr.mxu0 0.0
    %430 = vmatpush1.msra.mxu0 0.0
    %431 = vmatprep.subr.mxu0 0.0
    %432 = vmatpush1.msra.mxu0 0.0
    %433 = vmatprep.subr.mxu0 0.0
    %434 = vmatpush1.msra.mxu0 0.0
    %435 = vmatprep.subr.mxu0 0.0
    %436 = vmatpush1.msra.mxu0 0.0
    %437 = vmatprep.subr.mxu0 0.0
    %438 = vmatpush1.msra.mxu0 0.0
    %439 = vmatprep.subr.mxu0 0.0
    %440 = vmatpush1.msra.mxu0 0.0
    %441 = vmatprep.subr.mxu0 0.0
    %442 = vmatpush1.msra.mxu0 0.0
    %443 = vmatprep.subr.mxu0 0.0
    %444 = vmatpush1.msra.mxu0 0.0
    %445 = vmatprep.subr.mxu0 0.0
    %446 = vmatpush1.msra.mxu0 0.0
    %447 = vmatprep.subr.mxu0 0.0
    %448 = vmatpush1.msra.mxu0 0.0
    %449 = vmatprep.subr.mxu0 0.0
    %450 = vmatpush1.msra.mxu0 0.0
    %451 = vmatprep.subr.mxu0 0.0
    %452 = vmatpush1.msra.mxu0 0.0
    %453 = vmatprep.subr.mxu0 0.0
    %454 = vmatpush1.msra.mxu0 0.0
    %455 = vmatprep.mubr.f32.mxu0 0.0
    %456 = vmatmul.mubr.f32.gmra.mrb[0].mxu0 %v292
    %v457 = vpop.f32.mrb[0].mxu0
    %v458 = vadd.f32 %v389, %v457
    %v459 = vpop.f32.mrb[0].mxu0
    %460 = vdwg.mxu0
    %v461 = vtanh.pop %v458
    %v462 = vld [vmem:[#allocation5] sm:$0xff]
    %v463 = vld [vmem:[#allocation5 + $0x8] sm:$0xff]
    %v464 = vld [vmem:[#allocation5 + $0x10] sm:$0xff]
    %v465 = vld [vmem:[#allocation5 + $0x18] sm:$0xff]
    %v466 = vld [vmem:[#allocation5 + $0x20] sm:$0xff]
    %v467 = vld [vmem:[#allocation5 + $0x28] sm:$0xff]
    %v468 = vld [vmem:[#allocation5 + $0x30] sm:$0xff]
    %v469 = vld [vmem:[#allocation5 + $0x38] sm:$0xff]
    %v470 = vld [vmem:[#allocation5 + $0x40] sm:$0xff]
    %v471 = vld [vmem:[#allocation5 + $0x48] sm:$0xff]
    %v472 = vld [vmem:[#allocation5 + $0x50] sm:$0xff]
    %v473 = vld [vmem:[#allocation5 + $0x58] sm:$0xff]
    %v474 = vld [vmem:[#allocation5 + $0x60] sm:$0xff]
    %v475 = vld [vmem:[#allocation5 + $0x68] sm:$0xff]
    %v476 = vld [vmem:[#allocation5 + $0x70] sm:$0xff]
    %v477 = vld [vmem:[#allocation5 + $0x78] sm:$0xff]
    %v478 = vld [vmem:[#allocation5 + $0x80] sm:$0xff]
    %v479 = vld [vmem:[#allocation5 + $0x88] sm:$0xff]
    %v480 = vld [vmem:[#allocation5 + $0x90] sm:$0xff]
    %v481 = vld [vmem:[#allocation5 + $0x98] sm:$0xff]
    %v482 = vld [vmem:[#allocation5 + $0xa0] sm:$0xff]
    %v483 = vld [vmem:[#allocation5 + $0xa8] sm:$0xff]
    %v484 = vld [vmem:[#allocation5 + $0xb0] sm:$0xff]
    %v485 = vld [vmem:[#allocation5 + $0xb8] sm:$0xff]
    %v486 = vld [vmem:[#allocation5 + $0xc0] sm:$0xff]
    %v487 = vld [vmem:[#allocation5 + $0xc8] sm:$0xff]
    %v488 = vld [vmem:[#allocation5 + $0xd0] sm:$0xff]
    %v489 = vld [vmem:[#allocation5 + $0xd8] sm:$0xff]
    %v490 = vld [vmem:[#allocation5 + $0xe0] sm:$0xff]
    %v491 = vld [vmem:[#allocation5 + $0xe8] sm:$0xff]
    %v492 = vld [vmem:[#allocation5 + $0xf0] sm:$0xff]
    %v493 = vld [vmem:[#allocation5 + $0xf8] sm:$0xff]
    %v494 = vld [vmem:[%s8] sm:$0x3]
    %v496 = vlaneseq
    %v497 = vshrl.u32 %v496, 7
    %v498 = vsub.s32 0, %v497
    %v499 = vrot.slane %v494, %v498
    %v500 = vlaneseq
    %v501 = vshrl.u32 %v500, 7
    %v502 = vsub.s32 1, %v501
    %v503 = vrot.slane %v494, %v502
    %506 = vmatprep.subr.mxu0 %v463
    %507 = vmatpush1.msra.mxu0 %v462
    %508 = vmatprep.subr.mxu0 %v465
    %509 = vmatpush1.msra.mxu0 %v464
    %510 = vmatprep.subr.mxu0 %v467
    %511 = vmatpush1.msra.mxu0 %v466
    %512 = vmatprep.subr.mxu0 %v469
    %513 = vmatpush1.msra.mxu0 %v468
    %514 = vmatprep.subr.mxu0 %v471
    %515 = vmatpush1.msra.mxu0 %v470
    %516 = vmatprep.subr.mxu0 %v473
    %517 = vmatpush1.msra.mxu0 %v472
    %518 = vmatprep.subr.mxu0 %v475
    %519 = vmatpush1.msra.mxu0 %v474
    %520 = vmatprep.subr.mxu0 %v477
    %521 = vmatpush1.msra.mxu0 %v476
    %522 = vmatprep.subr.mxu0 %v479
    %523 = vmatpush1.msra.mxu0 %v478
    %524 = vmatprep.subr.mxu0 %v481
    %525 = vmatpush1.msra.mxu0 %v480
    %526 = vmatprep.subr.mxu0 %v483
    %527 = vmatpush1.msra.mxu0 %v482
    %528 = vmatprep.subr.mxu0 %v485
    %529 = vmatpush1.msra.mxu0 %v484
    %530 = vmatprep.subr.mxu0 %v487
    %531 = vmatpush1.msra.mxu0 %v486
    %532 = vmatprep.subr.mxu0 %v489
    %533 = vmatpush1.msra.mxu0 %v488
    %534 = vmatprep.subr.mxu0 %v491
    %535 = vmatpush1.msra.mxu0 %v490
    %536 = vmatprep.subr.mxu0 %v493
    %537 = vmatpush1.msra.mxu0 %v492
    %538 = vmatprep.subr.mxu0 0.0
    %539 = vmatpush1.msra.mxu0 0.0
    %540 = vmatprep.subr.mxu0 0.0
    %541 = vmatpush1.msra.mxu0 0.0
    %542 = vmatprep.subr.mxu0 0.0
    %543 = vmatpush1.msra.mxu0 0.0
    %544 = vmatprep.subr.mxu0 0.0
    %545 = vmatpush1.msra.mxu0 0.0
    %546 = vmatprep.subr.mxu0 0.0
    %547 = vmatpush1.msra.mxu0 0.0
    %548 = vmatprep.subr.mxu0 0.0
    %549 = vmatpush1.msra.mxu0 0.0
    %550 = vmatprep.subr.mxu0 0.0
    %551 = vmatpush1.msra.mxu0 0.0
    %552 = vmatprep.subr.mxu0 0.0
    %553 = vmatpush1.msra.mxu0 0.0
    %554 = vmatprep.subr.mxu0 0.0
    %555 = vmatpush1.msra.mxu0 0.0
    %556 = vmatprep.subr.mxu0 0.0
    %557 = vmatpush1.msra.mxu0 0.0
    %558 = vmatprep.subr.mxu0 0.0
    %559 = vmatpush1.msra.mxu0 0.0
    %560 = vmatprep.subr.mxu0 0.0
    %561 = vmatpush1.msra.mxu0 0.0
    %562 = vmatprep.subr.mxu0 0.0
    %563 = vmatpush1.msra.mxu0 0.0
    %564 = vmatprep.subr.mxu0 0.0
    %565 = vmatpush1.msra.mxu0 0.0
    %566 = vmatprep.subr.mxu0 0.0
    %567 = vmatpush1.msra.mxu0 0.0
    %568 = vmatprep.subr.mxu0 0.0
    %569 = vmatpush1.msra.mxu0 0.0
    %570 = vmatprep.mubr.f32.mxu0 0.0
    %571 = vmatmul.mubr.f32.gmra.mrb[0].mxu0 %v461
    %v572 = vpop.f32.mrb[0].mxu0
    %v573 = vadd.f32 %v499, %v572
    %v574 = vpop.f32.mrb[0].mxu0
    %v575 = vadd.f32 %v503, %v574
    %576 = vdwg.mxu0
    %v577 = vtanh.pop %v573
    %v578 = vtanh.pop %v575
    %579 = vst [vmem:[#allocation7] sm:$0xff] %v577
    %580 = vst [vmem:[#allocation7 + $0x8] sm:$0xff] %v578
    // Predicated region
    $region54: #{deep_multiview_fuzzy_kmeans_forward.1} parent=1 // pred_check
      _
    $region55: #{deep_multiview_fuzzy_kmeans_forward.1} parent=1 // pred_check_branch
      %582 = sbr.rel (0) target = $region57
    $region56: #{deep_multiview_fuzzy_kmeans_forward.1} parent=1 // pred_region
      _
    $region57: #{deep_multiview_fuzzy_kmeans_forward.1} parent=1 // pred_fallthru
      _
    // Predicated region
    $region58: #{deep_multiview_fuzzy_kmeans_forward.1} parent=1 // pred_check
      _
    $region59: #{deep_multiview_fuzzy_kmeans_forward.1} parent=1 // pred_check_branch
      %584 = sbr.rel (0) target = $region61
    $region60: #{deep_multiview_fuzzy_kmeans_forward.1} parent=1 // pred_region
      %s586 = ssub.s32 256, 256
      %587 = vsyncadd [#allocation4], %s586
      %s589 = sshll.u32 [#allocation7], 4
      %s590 = int_to_ptr.vmem [resolvable:$true] %s589
      %592 = dma.vmem_to_hbm [thread:$0]  %s590, 256, %s12, [#allocation4]
    $region61: #{deep_multiview_fuzzy_kmeans_forward.1} parent=1 // pred_fallthru
      _
    // Predicated region
    $region62: #{deep_multiview_fuzzy_kmeans_forward.1} parent=1 // pred_check
      _
    $region63: #{deep_multiview_fuzzy_kmeans_forward.1} parent=1 // pred_check_branch
      %594 = sbr.rel (0) target = $region65
    $region64: #{deep_multiview_fuzzy_kmeans_forward.1} parent=1 // pred_region
      _
    $region65: #{deep_multiview_fuzzy_kmeans_forward.1} parent=1 // pred_fallthru
      _
    // Predicated region
    $region66: #{deep_multiview_fuzzy_kmeans_forward.1} parent=1 // pred_check
      _
    $region67: #{deep_multiview_fuzzy_kmeans_forward.1} parent=1 // pred_check_branch
      %596 = sbr.rel (0) target = $region69
    $region68: #{deep_multiview_fuzzy_kmeans_forward.1} parent=1 // pred_region
      %597 = dma.done [#allocation4], 256
    $region69: #{deep_multiview_fuzzy_kmeans_forward.1} parent=1 // pred_fallthru
      _
    %598 = vsyncpa [#allocation3], 1
    %599 = vsyncpa [#allocation6], 1
    %600 = vsyncpa [#allocation4], 1

// kernel: deep_multiview_fuzzy_kmeans_forward.1
$region0: #{deep_multiview_fuzzy_kmeans_forward.1}
  #allocation0 [shape = 'u32[]', space=smem, size = 0x4, offset = 0x4, fixed_abs, tag = 'smem constant byte address 0x4 - core index']
  #allocation1 [shape = 'u32[144,128]{1,0:T(1,128)}', space=vmem, size = 0x12000, scoped, tag = 'internal scratch']
  %s0 = inlined_call_operand.vmem [shape: f32[8,256], index: 0, kind: input, shape index: {}]
  %s1 = inlined_call_operand.hbm [shape: f32[256,128], index: 1, kind: input, shape index: {}]
  %s2 = inlined_call_operand.vmem [shape: f32[1,128], index: 2, kind: input, shape index: {}]
  %s3 = inlined_call_operand.vmem [shape: f32[128,64], index: 3, kind: input, shape index: {}]
  %s4 = inlined_call_operand.vmem [shape: f32[1,64], index: 4, kind: input, shape index: {}]
  %s5 = inlined_call_operand.vmem [shape: f32[64,128], index: 5, kind: input, shape index: {}]
  %s6 = inlined_call_operand.vmem [shape: f32[1,128], index: 6, kind: input, shape index: {}]
  %s7 = inlined_call_operand.hbm [shape: f32[128,256], index: 7, kind: input, shape index: {}]
  %s8 = inlined_call_operand.vmem [shape: f32[1,256], index: 8, kind: input, shape index: {}]
  %s9 = inlined_call_operand.vmem [shape: f32[64,64], index: 9, kind: input, shape index: {}]
  %s10 = inlined_call_operand.vmem [shape: f32[1,64], index: 10, kind: input, shape index: {}]
  %s11 = inlined_call_operand.vmem [shape: f32[8,128], index: 11, kind: output, shape index: {0}]
  %s12 = inlined_call_operand.hbm [shape: f32[8,256], index: 12, kind: output, shape index: {1}]
  %13 = xla_tuple %s11, %s12
  %s14 = sld [smem:[#allocation0]]
  $region70: #{deep_multiview_fuzzy_kmeans_forward.1} parent=0
    _
  %s16 = ssub.s32 1, %s14
  %s17 = scalar_select 0, %s16, %s14
  $region1: #{deep_multiview_fuzzy_kmeans_forward.1} parent=0
    #allocation2 [shape = 'u8[131072]{0}', space=vmem, size = 0x20000, scoped, tag = 'input window, operand 1, single buffered']
    #allocation3 [shape = 's32[1]{0}', space=sflag, size = 0x4, scoped, tag = 'scoped memory for deep_multiview_fuzzy_kmeans_forward.1']
    #allocation4 [shape = 's32[1]{0}', space=sflag, size = 0x4, scoped, tag = 'scoped memory for deep_multiview_fuzzy_kmeans_forward.1']
    #allocation5 [shape = 'u8[131072]{0}', space=vmem, size = 0x20000, scoped, tag = 'input window, operand 7, single buffered']
    #allocation6 [shape = 's32[1]{0}', space=sflag, size = 0x4, scoped, tag = 'scoped memory for deep_multiview_fuzzy_kmeans_forward.1']
    #allocation7 [shape = 'u8[8192]{0}', space=vmem, size = 0x2000, scoped, tag = 'output window, operand 1, single buffered']
    %18 = vsyncpa [#allocation3], 0
    %19 = vsyncpa [#allocation6], 0
    %20 = vsyncpa [#allocation4], 0
    // Predicated region
    $region2: #{deep_multiview_fuzzy_kmeans_forward.1} parent=1 // pred_check
      _
    $region3: #{deep_multiview_fuzzy_kmeans_forward.1} parent=1 // pred_check_branch
      %22 = sbr.rel (0) target = $region5
    $region4: #{deep_multiview_fuzzy_kmeans_forward.1} parent=1 // pred_region
      _
    $region5: #{deep_multiview_fuzzy_kmeans_forward.1} parent=1 // pred_fallthru
      _
    // Predicated region
    $region6: #{deep_multiview_fuzzy_kmeans_forward.1} parent=1 // pred_check
      _
    $region7: #{deep_multiview_fuzzy_kmeans_forward.1} parent=1 // pred_check_branch
      %24 = sbr.rel (0) target = $region9
    $region8: #{deep_multiview_fuzzy_kmeans_forward.1} parent=1 // pred_region
      %s26 = ssub.s32 4096, 4096
      %27 = vsyncadd [#allocation3], %s26
      %s28 = sshll.u32 [#allocation2], 4
      %s29 = int_to_ptr.vmem [resolvable:$true] %s28
      %34 = dma.hbm_to_vmem [thread:$0]  %s1, 4096, %s29, [#allocation3], 128, 128, 8
    $region9: #{deep_multiview_fuzzy_kmeans_forward.1} parent=1 // pred_fallthru
      _
    // Predicated region
    $region10: #{deep_multiview_fuzzy_kmeans_forward.1} parent=1 // pred_check
      _
    $region11: #{deep_multiview_fuzzy_kmeans_forward.1} parent=1 // pred_check_branch
      %36 = sbr.rel (0) target = $region13
    $region12: #{deep_multiview_fuzzy_kmeans_forward.1} parent=1 // pred_region
      _
    $region13: #{deep_multiview_fuzzy_kmeans_forward.1} parent=1 // pred_fallthru
      _
    // Predicated region
    $region14: #{deep_multiview_fuzzy_kmeans_forward.1} parent=1 // pred_check
      _
    $region15: #{deep_multiview_fuzzy_kmeans_forward.1} parent=1 // pred_check_branch
      %38 = sbr.rel (0) target = $region17
    $region16: #{deep_multiview_fuzzy_kmeans_forward.1} parent=1 // pred_region
      _
    $region17: #{deep_multiview_fuzzy_kmeans_forward.1} parent=1 // pred_fallthru
      _
    // Predicated region
    $region18: #{deep_multiview_fuzzy_kmeans_forward.1} parent=1 // pred_check
      _
    $region19: #{deep_multiview_fuzzy_kmeans_forward.1} parent=1 // pred_check_branch
      %40 = sbr.rel (0) target = $region21
    $region20: #{deep_multiview_fuzzy_kmeans_forward.1} parent=1 // pred_region
      _
    $region21: #{deep_multiview_fuzzy_kmeans_forward.1} parent=1 // pred_fallthru
      _
    // Predicated region
    $region22: #{deep_multiview_fuzzy_kmeans_forward.1} parent=1 // pred_check
      _
    $region23: #{deep_multiview_fuzzy_kmeans_forward.1} parent=1 // pred_check_branch
      %42 = sbr.rel (0) target = $region25
    $region24: #{deep_multiview_fuzzy_kmeans_forward.1} parent=1 // pred_region
      _
    $region25: #{deep_multiview_fuzzy_kmeans_forward.1} parent=1 // pred_fallthru
      _
    // Predicated region
    $region26: #{deep_multiview_fuzzy_kmeans_forward.1} parent=1 // pred_check
      _
    $region27: #{deep_multiview_fuzzy_kmeans_forward.1} parent=1 // pred_check_branch
      %44 = sbr.rel (0) target = $region29
    $region28: #{deep_multiview_fuzzy_kmeans_forward.1} parent=1 // pred_region
      _
    $region29: #{deep_multiview_fuzzy_kmeans_forward.1} parent=1 // pred_fallthru
      _
    // Predicated region
    $region30: #{deep_multiview_fuzzy_kmeans_forward.1} parent=1 // pred_check
      _
    $region31: #{deep_multiview_fuzzy_kmeans_forward.1} parent=1 // pred_check_branch
      %46 = sbr.rel (0) target = $region33
    $region32: #{deep_multiview_fuzzy_kmeans_forward.1} parent=1 // pred_region
      %s48 = ssub.s32 4096, 4096
      %49 = vsyncadd [#allocation6], %s48
      %s50 = sshll.u32 [#allocation5], 4
      %s51 = int_to_ptr.vmem [resolvable:$true] %s50
      %56 = dma.hbm_to_vmem [thread:$0]  %s7, 4096, %s51, [#allocation6], 256, 256, 16
    $region33: #{deep_multiview_fuzzy_kmeans_forward.1} parent=1 // pred_fallthru
      _
    // Predicated region
    $region34: #{deep_multiview_fuzzy_kmeans_forward.1} parent=1 // pred_check
      _
    $region35: #{deep_multiview_fuzzy_kmeans_forward.1} parent=1 // pred_check_branch
      %58 = sbr.rel (0) target = $region37
    $region36: #{deep_multiview_fuzzy_kmeans_forward.1} parent=1 // pred_region
      _
    $region37: #{deep_multiview_fuzzy_kmeans_forward.1} parent=1 // pred_fallthru
      _
    // Predicated region
    $region38: #{deep_multiview_fuzzy_kmeans_forward.1} parent=1 // pred_check
      _
    $region39: #{deep_multiview_fuzzy_kmeans_forward.1} parent=1 // pred_check_branch
      %60 = sbr.rel (0) target = $region41
    $region40: #{deep_multiview_fuzzy_kmeans_forward.1} parent=1 // pred_region
      _
    $region41: #{deep_multiview_fuzzy_kmeans_forward.1} parent=1 // pred_fallthru
      _
    // Predicated region
    $region42: #{deep_multiview_fuzzy_kmeans_forward.1} parent=1 // pred_check
      _
    $region43: #{deep_multiview_fuzzy_kmeans_forward.1} parent=1 // pred_check_branch
      %62 = sbr.rel (0) target = $region45
    $region44: #{deep_multiview_fuzzy_kmeans_forward.1} parent=1 // pred_region
      _
    $region45: #{deep_multiview_fuzzy_kmeans_forward.1} parent=1 // pred_fallthru
      _
    // Predicated region
    $region46: #{deep_multiview_fuzzy_kmeans_forward.1} parent=1 // pred_check
      _
    $region47: #{deep_multiview_fuzzy_kmeans_forward.1} parent=1 // pred_check_branch
      %64 = sbr.rel (0) target = $region49
    $region48: #{deep_multiview_fuzzy_kmeans_forward.1} parent=1 // pred_region
      %65 = dma.done [#allocation3], 4096
    $region49: #{deep_multiview_fuzzy_kmeans_forward.1} parent=1 // pred_fallthru
      _
    // Predicated region
    $region50: #{deep_multiview_fuzzy_kmeans_forward.1} parent=1 // pred_check
      _
    $region51: #{deep_multiview_fuzzy_kmeans_forward.1} parent=1 // pred_check_branch
      %67 = sbr.rel (0) target = $region53
    $region52: #{deep_multiview_fuzzy_kmeans_forward.1} parent=1 // pred_region
      %68 = dma.done [#allocation6], 4096
    $region53: #{deep_multiview_fuzzy_kmeans_forward.1} parent=1 // pred_fallthru
      _
    %v69 = vld [vmem:[%s0] sm:$0xff]
    %v70 = vld [vmem:[%s0 + $0x8] sm:$0xff]
    %v71 = vld [vmem:[#allocation2] sm:$0xff]
    %v72 = vld [vmem:[#allocation2 + $0x8] sm:$0xff]
    %v73 = vld [vmem:[#allocation2 + $0x10] sm:$0xff]
    %v74 = vld [vmem:[#allocation2 + $0x18] sm:$0xff]
    %v75 = vld [vmem:[#allocation2 + $0x20] sm:$0xff]
    %v76 = vld [vmem:[#allocation2 + $0x28] sm:$0xff]
    %v77 = vld [vmem:[#allocation2 + $0x30] sm:$0xff]
    %v78 = vld [vmem:[#allocation2 + $0x38] sm:$0xff]
    %v79 = vld [vmem:[#allocation2 + $0x40] sm:$0xff]
    %v80 = vld [vmem:[#allocation2 + $0x48] sm:$0xff]
    %v81 = vld [vmem:[#allocation2 + $0x50] sm:$0xff]
    %v82 = vld [vmem:[#allocation2 + $0x58] sm:$0xff]
    %v83 = vld [vmem:[#allocation2 + $0x60] sm:$0xff]
    %v84 = vld [vmem:[#allocation2 + $0x68] sm:$0xff]
    %v85 = vld [vmem:[#allocation2 + $0x70] sm:$0xff]
    %v86 = vld [vmem:[#allocation2 + $0x78] sm:$0xff]
    %v87 = vld [vmem:[#allocation2 + $0x80] sm:$0xff]
    %v88 = vld [vmem:[#allocation2 + $0x88] sm:$0xff]
    %v89 = vld [vmem:[#allocation2 + $0x90] sm:$0xff]
    %v90 = vld [vmem:[#allocation2 + $0x98] sm:$0xff]
    %v91 = vld [vmem:[#allocation2 + $0xa0] sm:$0xff]
    %v92 = vld [vmem:[#allocation2 + $0xa8] sm:$0xff]
    %v93 = vld [vmem:[#allocation2 + $0xb0] sm:$0xff]
    %v94 = vld [vmem:[#allocation2 + $0xb8] sm:$0xff]
    %v95 = vld [vmem:[#allocation2 + $0xc0] sm:$0xff]
    %v96 = vld [vmem:[#allocation2 + $0xc8] sm:$0xff]
    %v97 = vld [vmem:[#allocation2 + $0xd0] sm:$0xff]
    %v98 = vld [vmem:[#allocation2 + $0xd8] sm:$0xff]
    %v99 = vld [vmem:[#allocation2 + $0xe0] sm:$0xff]
    %v100 = vld [vmem:[#allocation2 + $0xe8] sm:$0xff]
    %v101 = vld [vmem:[#allocation2 + $0xf0] sm:$0xff]
    %v102 = vld [vmem:[#allocation2 + $0xf8] sm:$0xff]
    %v103 = vld [vmem:[%s2] sm:$0x1]
    %v105 = vlaneseq
    %v106 = vshrl.u32 %v105, 7
    %v107 = vsub.s32 0, %v106
    %v108 = vrot.slane %v103, %v107
    %110 = vmatprep.subr.mxu0 0.0
    %111 = vmatpush1.msra.mxu0 %v71
    %112 = vmatprep.subr.mxu0 0.0
    %113 = vmatpush1.msra.mxu0 %v72
    %114 = vmatprep.subr.mxu0 0.0
    %115 = vmatpush1.msra.mxu0 %v73
    %116 = vmatprep.subr.mxu0 0.0
    %117 = vmatpush1.msra.mxu0 %v74
    %118 = vmatprep.subr.mxu0 0.0
    %119 = vmatpush1.msra.mxu0 %v75
    %120 = vmatprep.subr.mxu0 0.0
    %121 = vmatpush1.msra.mxu0 %v76
    %122 = vmatprep.subr.mxu0 0.0
    %123 = vmatpush1.msra.mxu0 %v77
    %124 = vmatprep.subr.mxu0 0.0
    %125 = vmatpush1.msra.mxu0 %v78
    %126 = vmatprep.subr.mxu0 0.0
    %127 = vmatpush1.msra.mxu0 %v79
    %128 = vmatprep.subr.mxu0 0.0
    %129 = vmatpush1.msra.mxu0 %v80
    %130 = vmatprep.subr.mxu0 0.0
    %131 = vmatpush1.msra.mxu0 %v81
    %132 = vmatprep.subr.mxu0 0.0
    %133 = vmatpush1.msra.mxu0 %v82
    %134 = vmatprep.subr.mxu0 0.0
    %135 = vmatpush1.msra.mxu0 %v83
    %136 = vmatprep.subr.mxu0 0.0
    %137 = vmatpush1.msra.mxu0 %v84
    %138 = vmatprep.subr.mxu0 0.0
    %139 = vmatpush1.msra.mxu0 %v85
    %140 = vmatprep.subr.mxu0 0.0
    %141 = vmatpush1.msra.mxu0 %v86
    %142 = vmatprep.subr.mxu0 0.0
    %143 = vmatpush1.msra.mxu0 %v87
    %144 = vmatprep.subr.mxu0 0.0
    %145 = vmatpush1.msra.mxu0 %v88
    %146 = vmatprep.subr.mxu0 0.0
    %147 = vmatpush1.msra.mxu0 %v89
    %148 = vmatprep.subr.mxu0 0.0
    %149 = vmatpush1.msra.mxu0 %v90
    %150 = vmatprep.subr.mxu0 0.0
    %151 = vmatpush1.msra.mxu0 %v91
    %152 = vmatprep.subr.mxu0 0.0
    %153 = vmatpush1.msra.mxu0 %v92
    %154 = vmatprep.subr.mxu0 0.0
    %155 = vmatpush1.msra.mxu0 %v93
    %156 = vmatprep.subr.mxu0 0.0
    %157 = vmatpush1.msra.mxu0 %v94
    %158 = vmatprep.subr.mxu0 0.0
    %159 = vmatpush1.msra.mxu0 %v95
    %160 = vmatprep.subr.mxu0 0.0
    %161 = vmatpush1.msra.mxu0 %v96
    %162 = vmatprep.subr.mxu0 0.0
    %163 = vmatpush1.msra.mxu0 %v97
    %164 = vmatprep.subr.mxu0 0.0
    %165 = vmatpush1.msra.mxu0 %v98
    %166 = vmatprep.subr.mxu0 0.0
    %167 = vmatpush1.msra.mxu0 %v99
    %168 = vmatprep.subr.mxu0 0.0
    %169 = vmatpush1.msra.mxu0 %v100
    %170 = vmatprep.subr.mxu0 0.0
    %171 = vmatpush1.msra.mxu0 %v101
    %172 = vmatprep.subr.mxu0 0.0
    %173 = vmatpush1.msra.mxu0 %v102
    %174 = vmatprep.mubr.f32.mxu0 %v70
    %175 = vmatmul.mubr.f32.gmra.mrb[0].mxu0 %v69
    %v176 = vpop.f32.mrb[0].mxu0
    %v177 = vadd.f32 %v108, %v176
    %v178 = vpop.f32.mrb[0].mxu0
    %179 = vdwg.mxu0
    %v180 = vtanh.pop %v177
    %v181 = vld [vmem:[%s3] sm:$0xff]
    %v182 = vld [vmem:[%s3 + $0x8] sm:$0xff]
    %v183 = vld [vmem:[%s3 + $0x10] sm:$0xff]
    %v184 = vld [vmem:[%s3 + $0x18] sm:$0xff]
    %v185 = vld [vmem:[%s3 + $0x20] sm:$0xff]
    %v186 = vld [vmem:[%s3 + $0x28] sm:$0xff]
    %v187 = vld [vmem:[%s3 + $0x30] sm:$0xff]
    %v188 = vld [vmem:[%s3 + $0x38] sm:$0xff]
    %v189 = vld [vmem:[%s3 + $0x40] sm:$0xff]
    %v190 = vld [vmem:[%s3 + $0x48] sm:$0xff]
    %v191 = vld [vmem:[%s3 + $0x50] sm:$0xff]
    %v192 = vld [vmem:[%s3 + $0x58] sm:$0xff]
    %v193 = vld [vmem:[%s3 + $0x60] sm:$0xff]
    %v194 = vld [vmem:[%s3 + $0x68] sm:$0xff]
    %v195 = vld [vmem:[%s3 + $0x70] sm:$0xff]
    %v196 = vld [vmem:[%s3 + $0x78] sm:$0xff]
    %v197 = vld [vmem:[%s4] sm:$0x1]
    %v199 = vlaneseq
    %v200 = vshrl.u32 %v199, 7
    %v201 = vsub.s32 0, %v200
    %v202 = vrot.slane %v197, %v201
    %204 = vmatprep.subr.mxu0 0.0
    %205 = vmatpush1.msra.mxu0 %v181
    %206 = vmatprep.subr.mxu0 0.0
    %207 = vmatpush1.msra.mxu0 %v182
    %208 = vmatprep.subr.mxu0 0.0
    %209 = vmatpush1.msra.mxu0 %v183
    %210 = vmatprep.subr.mxu0 0.0
    %211 = vmatpush1.msra.mxu0 %v184
    %212 = vmatprep.subr.mxu0 0.0
    %213 = vmatpush1.msra.mxu0 %v185
    %214 = vmatprep.subr.mxu0 0.0
    %215 = vmatpush1.msra.mxu0 %v186
    %216 = vmatprep.subr.mxu0 0.0
    %217 = vmatpush1.msra.mxu0 %v187
    %218 = vmatprep.subr.mxu0 0.0
    %219 = vmatpush1.msra.mxu0 %v188
    %220 = vmatprep.subr.mxu0 0.0
    %221 = vmatpush1.msra.mxu0 %v189
    %222 = vmatprep.subr.mxu0 0.0
    %223 = vmatpush1.msra.mxu0 %v190
    %224 = vmatprep.subr.mxu0 0.0
    %225 = vmatpush1.msra.mxu0 %v191
    %226 = vmatprep.subr.mxu0 0.0
    %227 = vmatpush1.msra.mxu0 %v192
    %228 = vmatprep.subr.mxu0 0.0
    %229 = vmatpush1.msra.mxu0 %v193
    %230 = vmatprep.subr.mxu0 0.0
    %231 = vmatpush1.msra.mxu0 %v194
    %232 = vmatprep.subr.mxu0 0.0
    %233 = vmatpush1.msra.mxu0 %v195
    %234 = vmatprep.subr.mxu0 0.0
    %235 = vmatpush1.msra.mxu0 %v196
    %236 = vmatprep.subr.mxu0 0.0
    %237 = vmatpush1.msra.mxu0 0.0
    %238 = vmatprep.subr.mxu0 0.0
    %239 = vmatpush1.msra.mxu0 0.0
    %240 = vmatprep.subr.mxu0 0.0
    %241 = vmatpush1.msra.mxu0 0.0
    %242 = vmatprep.subr.mxu0 0.0
    %243 = vmatpush1.msra.mxu0 0.0
    %244 = vmatprep.subr.mxu0 0.0
    %245 = vmatpush1.msra.mxu0 0.0
    %246 = vmatprep.subr.mxu0 0.0
    %247 = vmatpush1.msra.mxu0 0.0
    %248 = vmatprep.subr.mxu0 0.0
    %249 = vmatpush1.msra.mxu0 0.0
    %250 = vmatprep.subr.mxu0 0.0
    %251 = vmatpush1.msra.mxu0 0.0
    %252 = vmatprep.subr.mxu0 0.0
    %253 = vmatpush1.msra.mxu0 0.0
    %254 = vmatprep.subr.mxu0 0.0
    %255 = vmatpush1.msra.mxu0 0.0
    %256 = vmatprep.subr.mxu0 0.0
    %257 = vmatpush1.msra.mxu0 0.0
    %258 = vmatprep.subr.mxu0 0.0
    %259 = vmatpush1.msra.mxu0 0.0
    %260 = vmatprep.subr.mxu0 0.0
    %261 = vmatpush1.msra.mxu0 0.0
    %262 = vmatprep.subr.mxu0 0.0
    %263 = vmatpush1.msra.mxu0 0.0
    %264 = vmatprep.subr.mxu0 0.0
    %265 = vmatpush1.msra.mxu0 0.0
    %266 = vmatprep.subr.mxu0 0.0
    %267 = vmatpush1.msra.mxu0 0.0
    %268 = vmatprep.mubr.f32.mxu0 0.0
    %269 = vmatmul.mubr.f32.gmra.mrb[0].mxu0 %v180
    %v270 = vpop.f32.mrb[0].mxu0
    %v271 = vadd.f32 %v202, %v270
    %v272 = vpop.f32.mrb[0].mxu0
    %273 = vdwg.mxu0
    %v274 = vtanh.pop %v271
    %v275 = vld [vmem:[%s9] sm:$0xff]
    %v276 = vld [vmem:[%s9 + $0x8] sm:$0xff]
    %v277 = vld [vmem:[%s9 + $0x10] sm:$0xff]
    %v278 = vld [vmem:[%s9 + $0x18] sm:$0xff]
    %v279 = vld [vmem:[%s9 + $0x20] sm:$0xff]
    %v280 = vld [vmem:[%s9 + $0x28] sm:$0xff]
    %v281 = vld [vmem:[%s9 + $0x30] sm:$0xff]
    %v282 = vld [vmem:[%s9 + $0x38] sm:$0xff]
    %v283 = vld [vmem:[%s10] sm:$0x1]
    %v285 = vlaneseq
    %v286 = vshrl.u32 %v285, 7
    %v287 = vsub.s32 0, %v286
    %v288 = vrot.slane %v283, %v287
    %vm290 = vcmask 523264
    %v292 = vsel %vm290, %v274, 0
    %294 = vmatprep.subr.mxu0 0.0
    %295 = vmatpush1.msra.mxu0 %v275
    %296 = vmatprep.subr.mxu0 0.0
    %297 = vmatpush1.msra.mxu0 %v276
    %298 = vmatprep.subr.mxu0 0.0
    %299 = vmatpush1.msra.mxu0 %v277
    %300 = vmatprep.subr.mxu0 0.0
    %301 = vmatpush1.msra.mxu0 %v278
    %302 = vmatprep.subr.mxu0 0.0
    %303 = vmatpush1.msra.mxu0 %v279
    %304 = vmatprep.subr.mxu0 0.0
    %305 = vmatpush1.msra.mxu0 %v280
    %306 = vmatprep.subr.mxu0 0.0
    %307 = vmatpush1.msra.mxu0 %v281
    %308 = vmatprep.subr.mxu0 0.0
    %309 = vmatpush1.msra.mxu0 %v282
    %310 = vmatprep.subr.mxu0 0.0
    %311 = vmatpush1.msra.mxu0 0.0
    %312 = vmatprep.subr.mxu0 0.0
    %313 = vmatpush1.msra.mxu0 0.0
    %314 = vmatprep.subr.mxu0 0.0
    %315 = vmatpush1.msra.mxu0 0.0
    %316 = vmatprep.subr.mxu0 0.0
    %317 = vmatpush1.msra.mxu0 0.0
    %318 = vmatprep.subr.mxu0 0.0
    %319 = vmatpush1.msra.mxu0 0.0
    %320 = vmatprep.subr.mxu0 0.0
    %321 = vmatpush1.msra.mxu0 0.0
    %322 = vmatprep.subr.mxu0 0.0
    %323 = vmatpush1.msra.mxu0 0.0
    %324 = vmatprep.subr.mxu0 0.0
    %325 = vmatpush1.msra.mxu0 0.0
    %326 = vmatprep.subr.mxu0 0.0
    %327 = vmatpush1.msra.mxu0 0.0
    %328 = vmatprep.subr.mxu0 0.0
    %329 = vmatpush1.msra.mxu0 0.0
    %330 = vmatprep.subr.mxu0 0.0
    %331 = vmatpush1.msra.mxu0 0.0
    %332 = vmatprep.subr.mxu0 0.0
    %333 = vmatpush1.msra.mxu0 0.0
    %334 = vmatprep.subr.mxu0 0.0
    %335 = vmatpush1.msra.mxu0 0.0
    %336 = vmatprep.subr.mxu0 0.0
    %337 = vmatpush1.msra.mxu0 0.0
    %338 = vmatprep.subr.mxu0 0.0
    %339 = vmatpush1.msra.mxu0 0.0
    %340 = vmatprep.subr.mxu0 0.0
    %341 = vmatpush1.msra.mxu0 0.0
    %342 = vmatprep.subr.mxu0 0.0
    %343 = vmatpush1.msra.mxu0 0.0
    %344 = vmatprep.subr.mxu0 0.0
    %345 = vmatpush1.msra.mxu0 0.0
    %346 = vmatprep.subr.mxu0 0.0
    %347 = vmatpush1.msra.mxu0 0.0
    %348 = vmatprep.subr.mxu0 0.0
    %349 = vmatpush1.msra.mxu0 0.0
    %350 = vmatprep.subr.mxu0 0.0
    %351 = vmatpush1.msra.mxu0 0.0
    %352 = vmatprep.subr.mxu0 0.0
    %353 = vmatpush1.msra.mxu0 0.0
    %354 = vmatprep.subr.mxu0 0.0
    %355 = vmatpush1.msra.mxu0 0.0
    %356 = vmatprep.subr.mxu0 0.0
    %357 = vmatpush1.msra.mxu0 0.0
    %358 = vmatprep.mubr.f32.mxu0 0.0
    %359 = vmatmul.mubr.f32.gmra.mrb[0].mxu0 %v292
    %v360 = vpop.f32.mrb[0].mxu0
    %v361 = vadd.f32 %v288, %v360
    %v362 = vpop.f32.mrb[0].mxu0
    %363 = vdwg.mxu0
    %v364 = vxor.u32 %v361, 2147483648
    %v365 = vmul.f32 %v364, 1.442695
    %v366 = vpow.pop %v365
    %v367 = vadd.f32 %v366, 1.0
    %v368 = vrcp.pop %v367
    %v369 = vmul.f32 1.0, %v368
    %371 = vrot.lane.b32.xlu0 %v369, 64
    %v372 = vpop.permute.xlu0 %371
    %v374 = vsel %vm290, %v274, %v372
    %375 = vst [vmem:[%s11] sm:$0xff] %v374
    %v376 = vld [vmem:[%s5] sm:$0xff]
    %v377 = vld [vmem:[%s5 + $0x8] sm:$0xff]
    %v378 = vld [vmem:[%s5 + $0x10] sm:$0xff]
    %v379 = vld [vmem:[%s5 + $0x18] sm:$0xff]
    %v380 = vld [vmem:[%s5 + $0x20] sm:$0xff]
    %v381 = vld [vmem:[%s5 + $0x28] sm:$0xff]
    %v382 = vld [vmem:[%s5 + $0x30] sm:$0xff]
    %v383 = vld [vmem:[%s5 + $0x38] sm:$0xff]
    %v384 = vld [vmem:[%s6] sm:$0x1]
    %v386 = vlaneseq
    %v387 = vshrl.u32 %v386, 7
    %v388 = vsub.s32 0, %v387
    %v389 = vrot.slane %v384, %v388
    %391 = vmatprep.subr.mxu0 0.0
    %392 = vmatpush1.msra.mxu0 %v376
    %393 = vmatprep.subr.mxu0 0.0
    %394 = vmatpush1.msra.mxu0 %v377
    %395 = vmatprep.subr.mxu0 0.0
    %396 = vmatpush1.msra.mxu0 %v378
    %397 = vmatprep.subr.mxu0 0.0
    %398 = vmatpush1.msra.mxu0 %v379
    %399 = vmatprep.subr.mxu0 0.0
    %400 = vmatpush1.msra.mxu0 %v380
    %401 = vmatprep.subr.mxu0 0.0
    %402 = vmatpush1.msra.mxu0 %v381
    %403 = vmatprep.subr.mxu0 0.0
    %404 = vmatpush1.msra.mxu0 %v382
    %405 = vmatprep.subr.mxu0 0.0
    %406 = vmatpush1.msra.mxu0 %v383
    %407 = vmatprep.subr.mxu0 0.0
    %408 = vmatpush1.msra.mxu0 0.0
    %409 = vmatprep.subr.mxu0 0.0
    %410 = vmatpush1.msra.mxu0 0.0
    %411 = vmatprep.subr.mxu0 0.0
    %412 = vmatpush1.msra.mxu0 0.0
    %413 = vmatprep.subr.mxu0 0.0
    %414 = vmatpush1.msra.mxu0 0.0
    %415 = vmatprep.subr.mxu0 0.0
    %416 = vmatpush1.msra.mxu0 0.0
    %417 = vmatprep.subr.mxu0 0.0
    %418 = vmatpush1.msra.mxu0 0.0
    %419 = vmatprep.subr.mxu0 0.0
    %420 = vmatpush1.msra.mxu0 0.0
    %421 = vmatprep.subr.mxu0 0.0
    %422 = vmatpush1.msra.mxu0 0.0
    %423 = vmatprep.subr.mxu0 0.0
    %424 = vmatpush1.msra.mxu0 0.0
    %425 = vmatprep.subr.mxu0 0.0
    %426 = vmatpush1.msra.mxu0 0.0
    %427 = vmatprep.subr.mxu0 0.0
    %428 = vmatpush1.msra.mxu0 0.0
    %429 = vmatprep.subr.mxu0 0.0
    %430 = vmatpush1.msra.mxu0 0.0
    %431 = vmatprep.subr.mxu0 0.0
    %432 = vmatpush1.msra.mxu0 0.0
    %433 = vmatprep.subr.mxu0 0.0
    %434 = vmatpush1.msra.mxu0 0.0
    %435 = vmatprep.subr.mxu0 0.0
    %436 = vmatpush1.msra.mxu0 0.0
    %437 = vmatprep.subr.mxu0 0.0
    %438 = vmatpush1.msra.mxu0 0.0
    %439 = vmatprep.subr.mxu0 0.0
    %440 = vmatpush1.msra.mxu0 0.0
    %441 = vmatprep.subr.mxu0 0.0
    %442 = vmatpush1.msra.mxu0 0.0
    %443 = vmatprep.subr.mxu0 0.0
    %444 = vmatpush1.msra.mxu0 0.0
    %445 = vmatprep.subr.mxu0 0.0
    %446 = vmatpush1.msra.mxu0 0.0
    %447 = vmatprep.subr.mxu0 0.0
    %448 = vmatpush1.msra.mxu0 0.0
    %449 = vmatprep.subr.mxu0 0.0
    %450 = vmatpush1.msra.mxu0 0.0
    %451 = vmatprep.subr.mxu0 0.0
    %452 = vmatpush1.msra.mxu0 0.0
    %453 = vmatprep.subr.mxu0 0.0
    %454 = vmatpush1.msra.mxu0 0.0
    %455 = vmatprep.mubr.f32.mxu0 0.0
    %456 = vmatmul.mubr.f32.gmra.mrb[0].mxu0 %v292
    %v457 = vpop.f32.mrb[0].mxu0
    %v458 = vadd.f32 %v389, %v457
    %v459 = vpop.f32.mrb[0].mxu0
    %460 = vdwg.mxu0
    %v461 = vtanh.pop %v458
    %v462 = vld [vmem:[#allocation5] sm:$0xff]
    %v463 = vld [vmem:[#allocation5 + $0x8] sm:$0xff]
    %v464 = vld [vmem:[#allocation5 + $0x10] sm:$0xff]
    %v465 = vld [vmem:[#allocation5 + $0x18] sm:$0xff]
    %v466 = vld [vmem:[#allocation5 + $0x20] sm:$0xff]
    %v467 = vld [vmem:[#allocation5 + $0x28] sm:$0xff]
    %v468 = vld [vmem:[#allocation5 + $0x30] sm:$0xff]
    %v469 = vld [vmem:[#allocation5 + $0x38] sm:$0xff]
    %v470 = vld [vmem:[#allocation5 + $0x40] sm:$0xff]
    %v471 = vld [vmem:[#allocation5 + $0x48] sm:$0xff]
    %v472 = vld [vmem:[#allocation5 + $0x50] sm:$0xff]
    %v473 = vld [vmem:[#allocation5 + $0x58] sm:$0xff]
    %v474 = vld [vmem:[#allocation5 + $0x60] sm:$0xff]
    %v475 = vld [vmem:[#allocation5 + $0x68] sm:$0xff]
    %v476 = vld [vmem:[#allocation5 + $0x70] sm:$0xff]
    %v477 = vld [vmem:[#allocation5 + $0x78] sm:$0xff]
    %v478 = vld [vmem:[#allocation5 + $0x80] sm:$0xff]
    %v479 = vld [vmem:[#allocation5 + $0x88] sm:$0xff]
    %v480 = vld [vmem:[#allocation5 + $0x90] sm:$0xff]
    %v481 = vld [vmem:[#allocation5 + $0x98] sm:$0xff]
    %v482 = vld [vmem:[#allocation5 + $0xa0] sm:$0xff]
    %v483 = vld [vmem:[#allocation5 + $0xa8] sm:$0xff]
    %v484 = vld [vmem:[#allocation5 + $0xb0] sm:$0xff]
    %v485 = vld [vmem:[#allocation5 + $0xb8] sm:$0xff]
    %v486 = vld [vmem:[#allocation5 + $0xc0] sm:$0xff]
    %v487 = vld [vmem:[#allocation5 + $0xc8] sm:$0xff]
    %v488 = vld [vmem:[#allocation5 + $0xd0] sm:$0xff]
    %v489 = vld [vmem:[#allocation5 + $0xd8] sm:$0xff]
    %v490 = vld [vmem:[#allocation5 + $0xe0] sm:$0xff]
    %v491 = vld [vmem:[#allocation5 + $0xe8] sm:$0xff]
    %v492 = vld [vmem:[#allocation5 + $0xf0] sm:$0xff]
    %v493 = vld [vmem:[#allocation5 + $0xf8] sm:$0xff]
    %v494 = vld [vmem:[%s8] sm:$0x3]
    %v496 = vlaneseq
    %v497 = vshrl.u32 %v496, 7
    %v498 = vsub.s32 0, %v497
    %v499 = vrot.slane %v494, %v498
    %v500 = vlaneseq
    %v501 = vshrl.u32 %v500, 7
    %v502 = vsub.s32 1, %v501
    %v503 = vrot.slane %v494, %v502
    %506 = vmatprep.subr.mxu0 %v463
    %507 = vmatpush1.msra.mxu0 %v462
    %508 = vmatprep.subr.mxu0 %v465
    %509 = vmatpush1.msra.mxu0 %v464
    %510 = vmatprep.subr.mxu0 %v467
    %511 = vmatpush1.msra.mxu0 %v466
    %512 = vmatprep.subr.mxu0 %v469
    %513 = vmatpush1.msra.mxu0 %v468
    %514 = vmatprep.subr.mxu0 %v471
    %515 = vmatpush1.msra.mxu0 %v470
    %516 = vmatprep.subr.mxu0 %v473
    %517 = vmatpush1.msra.mxu0 %v472
    %518 = vmatprep.subr.mxu0 %v475
    %519 = vmatpush1.msra.mxu0 %v474
    %520 = vmatprep.subr.mxu0 %v477
    %521 = vmatpush1.msra.mxu0 %v476
    %522 = vmatprep.subr.mxu0 %v479
    %523 = vmatpush1.msra.mxu0 %v478
    %524 = vmatprep.subr.mxu0 %v481
    %525 = vmatpush1.msra.mxu0 %v480
    %526 = vmatprep.subr.mxu0 %v483
    %527 = vmatpush1.msra.mxu0 %v482
    %528 = vmatprep.subr.mxu0 %v485
    %529 = vmatpush1.msra.mxu0 %v484
    %530 = vmatprep.subr.mxu0 %v487
    %531 = vmatpush1.msra.mxu0 %v486
    %532 = vmatprep.subr.mxu0 %v489
    %533 = vmatpush1.msra.mxu0 %v488
    %534 = vmatprep.subr.mxu0 %v491
    %535 = vmatpush1.msra.mxu0 %v490
    %536 = vmatprep.subr.mxu0 %v493
    %537 = vmatpush1.msra.mxu0 %v492
    %538 = vmatprep.subr.mxu0 0.0
    %539 = vmatpush1.msra.mxu0 0.0
    %540 = vmatprep.subr.mxu0 0.0
    %541 = vmatpush1.msra.mxu0 0.0
    %542 = vmatprep.subr.mxu0 0.0
    %543 = vmatpush1.msra.mxu0 0.0
    %544 = vmatprep.subr.mxu0 0.0
    %545 = vmatpush1.msra.mxu0 0.0
    %546 = vmatprep.subr.mxu0 0.0
    %547 = vmatpush1.msra.mxu0 0.0
    %548 = vmatprep.subr.mxu0 0.0
    %549 = vmatpush1.msra.mxu0 0.0
    %550 = vmatprep.subr.mxu0 0.0
    %551 = vmatpush1.msra.mxu0 0.0
    %552 = vmatprep.subr.mxu0 0.0
    %553 = vmatpush1.msra.mxu0 0.0
    %554 = vmatprep.subr.mxu0 0.0
    %555 = vmatpush1.msra.mxu0 0.0
    %556 = vmatprep.subr.mxu0 0.0
    %557 = vmatpush1.msra.mxu0 0.0
    %558 = vmatprep.subr.mxu0 0.0
    %559 = vmatpush1.msra.mxu0 0.0
    %560 = vmatprep.subr.mxu0 0.0
    %561 = vmatpush1.msra.mxu0 0.0
    %562 = vmatprep.subr.mxu0 0.0
    %563 = vmatpush1.msra.mxu0 0.0
    %564 = vmatprep.subr.mxu0 0.0
    %565 = vmatpush1.msra.mxu0 0.0
    %566 = vmatprep.subr.mxu0 0.0
    %567 = vmatpush1.msra.mxu0 0.0
    %568 = vmatprep.subr.mxu0 0.0
    %569 = vmatpush1.msra.mxu0 0.0
    %570 = vmatprep.mubr.f32.mxu0 0.0
    %571 = vmatmul.mubr.f32.gmra.mrb[0].mxu0 %v461
    %v572 = vpop.f32.mrb[0].mxu0
    %v573 = vadd.f32 %v499, %v572
    %v574 = vpop.f32.mrb[0].mxu0
    %v575 = vadd.f32 %v503, %v574
    %576 = vdwg.mxu0
    %v577 = vtanh.pop %v573
    %v578 = vtanh.pop %v575
    %579 = vst [vmem:[#allocation7] sm:$0xff] %v577
    %580 = vst [vmem:[#allocation7 + $0x8] sm:$0xff] %v578
    // Predicated region
    $region54: #{deep_multiview_fuzzy_kmeans_forward.1} parent=1 // pred_check
      _
    $region55: #{deep_multiview_fuzzy_kmeans_forward.1} parent=1 // pred_check_branch
      %582 = sbr.rel (0) target = $region57
    $region56: #{deep_multiview_fuzzy_kmeans_forward.1} parent=1 // pred_region
      _
    $region57: #{deep_multiview_fuzzy_kmeans_forward.1} parent=1 // pred_fallthru
      _
    // Predicated region
    $region58: #{deep_multiview_fuzzy_kmeans_forward.1} parent=1 // pred_check
      _
    $region59: #{deep_multiview_fuzzy_kmeans_forward.1} parent=1 // pred_check_branch
      %584 = sbr.rel (0) target = $region61
    $region60: #{deep_multiview_fuzzy_kmeans_forward.1} parent=1 // pred_region
      %s586 = ssub.s32 256, 256
      %587 = vsyncadd [#allocation4], %s586
      %s589 = sshll.u32 [#allocation7], 4
      %s590 = int_to_ptr.vmem [resolvable:$true] %s589
      %592 = dma.vmem_to_hbm [thread:$0]  %s590, 256, %s12, [#allocation4]
    $region61: #{deep_multiview_fuzzy_kmeans_forward.1} parent=1 // pred_fallthru
      _
    // Predicated region
    $region62: #{deep_multiview_fuzzy_kmeans_forward.1} parent=1 // pred_check
      _
    $region63: #{deep_multiview_fuzzy_kmeans_forward.1} parent=1 // pred_check_branch
      %594 = sbr.rel (0) target = $region65
    $region64: #{deep_multiview_fuzzy_kmeans_forward.1} parent=1 // pred_region
      _
    $region65: #{deep_multiview_fuzzy_kmeans_forward.1} parent=1 // pred_fallthru
      _
    // Predicated region
    $region66: #{deep_multiview_fuzzy_kmeans_forward.1} parent=1 // pred_check
      _
    $region67: #{deep_multiview_fuzzy_kmeans_forward.1} parent=1 // pred_check_branch
      %596 = sbr.rel (0) target = $region69
    $region68: #{deep_multiview_fuzzy_kmeans_forward.1} parent=1 // pred_region
      %597 = dma.done [#allocation4], 256
    $region69: #{deep_multiview_fuzzy_kmeans_forward.1} parent=1 // pred_fallthru
      _
    %598 = vsyncpa [#allocation3], 1
    %599 = vsyncpa [#allocation6], 1
    %600 = vsyncpa [#allocation4], 1

</llo_original>
